<compile_context>
chip_gen: v6e
topology: v6e:2x2x1
jax: 0.10.0
libtpu: 0.0.40
codegen_flags: <defaults>
</compile_context>

<pallas_src>
import functools

import jax
import jax.numpy as jnp
from jax.experimental import pallas as pl
from jax.experimental.pallas import tpu as pltpu


def _layer_norm(x, w, b, eps=1e-5):
    mu = jnp.mean(x, axis=-1, keepdims=True)
    var = jnp.mean((x - mu) ** 2, axis=-1, keepdims=True)
    return (x - mu) * jax.lax.rsqrt(var + eps) * w + b


def _encoder_kernel(x_ref, posb_ref, inw_ref, wqkv_ref, wo_ref,
                    f1w_ref, f2w_ref, pslab_ref, outw_ref, outb_ref,
                    o_ref, h_ref, *, nhead, fast_math):
    l = pl.program_id(1)
    n_layers = pl.num_programs(1)

    M, d = h_ref.shape                  # M = TB * S  (flat rows for all 2-D matmuls)
    TB, S, F = x_ref.shape
    hd = d // nhead
    ffd = f1w_ref.shape[-1]
    F_pad = outw_ref.shape[-1]
    cdt = wqkv_ref.dtype                # bf16 (fast path) / f32 (exact path)

    def mxu(a, w):                      # (m,k)@(k,n) -> f32; MXU inputs in the weight dtype
        return jnp.dot(a.astype(w.dtype), w, preferred_element_type=jnp.float32)

    # ---- first layer step only: input projection + (pos emb + input bias) -> scratch ----
    @pl.when(l == 0)
    def _init():
        x = x_ref[...].reshape(M, F)                                   # flat batch rows
        h0 = mxu(x, inw_ref[...])                                      # (M, d) f32
        h_ref[...] = (h0.reshape(TB, S, d) + posb_ref[0]).reshape(M, d)

    h = h_ref[...]                                                     # (M, d) f32, resident
    pv = pslab_ref[0]                                                  # (8, W) packed per-layer
    #   rows: 0 qkv_b | 1 attn_out_b | 2 ln1_w | 3 ln1_b | 4 ln2_w | 5 ln2_b | 6 f1_b | 7 f2_b

    # ---- multi-head self attention ----
    # fused QKV: one full-width (M, d) @ (d, 3d) MXU matmul; 1/sqrt(hd) folded into Wq/bq.
    qkv = mxu(h, wqkv_ref[0]) + pv[0:1, :3 * d]                        # (M, 3d) f32

    def split_heads(z2d):   # (M, d) -> (H*TB, S, hd); leading-dim reshapes + static slices only
        parts = [z2d[:, i * hd:(i + 1) * hd].reshape(1, M, hd) for i in range(nhead)]
        return jnp.concatenate(parts, axis=0).reshape(nhead * TB, S, hd)

    q = split_heads(qkv[:, :d]).astype(cdt)
    k = split_heads(qkv[:, d:2 * d]).astype(cdt)
    v = split_heads(qkv[:, 2 * d:]).astype(cdt)

    # block-diagonal over (head, batch element): batched 3-D bmms with leading batch dim.
    s = jnp.einsum('bqe,bke->bqk', q, k, preferred_element_type=jnp.float32)   # (H*TB, S, S)
    s = s - jnp.max(s, axis=-1, keepdims=True)
    p = jnp.exp(s)
    denom = jnp.sum(p, axis=-1, keepdims=True)                         # (H*TB, S, 1)
    ctx = jnp.einsum('bqk,bke->bqe', p.astype(cdt), v,
                     preferred_element_type=jnp.float32)               # (H*TB, S, hd)
    # deferred softmax normalization: scale the small (..,hd) tensor, not the (..,S) one.
    ctx = ctx * pl.reciprocal(denom, approx=fast_math)

    # merge heads back into lanes, then ONE flat (M,d)@(d,d) projection: the head reduction
    # happens inside the MXU contraction (no (H,S,d) intermediate, no VPU head-sum).
    ctx = ctx.reshape(nhead, M, hd)
    ctx = jnp.concatenate([ctx[i] for i in range(nhead)], axis=-1)     # (M, d) f32
    attn = mxu(ctx, wo_ref[0]) + pv[1:2, :d]                           # (M, d)

    # post-norm residual (PyTorch norm_first=False); LN statistics in f32.
    h = _layer_norm(h + attn, pv[2:3, :d], pv[3:4, :d])

    # ---- feed forward (ReLU) ----
    ffh = jnp.maximum(mxu(h, f1w_ref[0]) + pv[6:7, :ffd], 0.0)         # (M, dim_ff)
    ffh = mxu(ffh, f2w_ref[0]) + pv[7:8, :d]                           # (M, d)
    h = _layer_norm(h + ffh, pv[4:5, :d], pv[5:6, :d])

    h_ref[...] = h

    # ---- last layer step only: output projection into lane-dense padded slab ----
    @pl.when(l == n_layers - 1)
    def _final():
        out = mxu(h, outw_ref[...]) + outb_ref[...]                    # (M, F_pad)
        o_ref[...] = out.reshape(TB, S, F_pad).astype(o_ref.dtype)

    # TODO(synk): for long sequences on v7x (64 MiB VMEM/TC) the (H*TB, S, S) score tensor
    # should be tiled over query blocks (flash-style online softmax).


def _vmem_limit_bytes():
    cap = 64 * 1024 * 1024
    try:
        info = pltpu.get_tpu_info()
        cap = int(getattr(info, "vmem_capacity_bytes", cap) or cap)
    except Exception:
        pass
    # ~7/8 of physical, capped: ~112 MiB on 128 MiB chips (v5e/v6e), ~56 MiB on v7x's 64 MiB/TC.
    return min(cap - cap // 8, 112 * 1024 * 1024)


def prepare_params(params, *, num_layers, nhead, fast_math=True):
    """One-time weight preparation (transposes, head layout, bf16 cast, padding, scale fold)."""
    L = num_layers
    d = params['pos'].shape[-1]
    S = params['pos'].shape[1]
    F = params['in_w'].shape[1]
    ffd = params['f1_w'].shape[1]
    hd = d // nhead
    wdt = jnp.bfloat16 if fast_math else jnp.float32
    F_pad = max(128, -(-F // 128) * 128)
    W = max(128, -(-max(3 * d, ffd, d) // 128) * 128)

    # input projection; fold input bias into the positional embedding (one fewer operand).
    in_w_t = params['in_w'].T.astype(wdt)                                       # (F, d)
    pos_b = (params['pos'] + params['in_b'].reshape(1, 1, d)).astype(jnp.float32)  # (1, S, d)

    # fused QKV weights, (L, d, 3d) with columns [q | k | v]; 1/sqrt(hd) folded into the q part.
    scale = 1.0 / (hd ** 0.5)
    qkv_w = jnp.asarray(params['qkv_w'])                                        # (L, 3d, d) rows=out
    qkv_b = jnp.asarray(params['qkv_b'])                                        # (L, 3d)
    qkv_w = jnp.concatenate([qkv_w[:, :d, :] * scale, qkv_w[:, d:, :]], axis=1)
    qkv_b = jnp.concatenate([qkv_b[:, :d] * scale, qkv_b[:, d:]], axis=1)
    wqkv = jnp.swapaxes(qkv_w, 1, 2).astype(wdt)                                # (L, d, 3d)

    wo = jnp.swapaxes(params['ao_w'], 1, 2).astype(wdt)                         # (L, d, d) rows=in
    f1w = jnp.swapaxes(params['f1_w'], 1, 2).astype(wdt)                        # (L, d, ff)
    f2w = jnp.swapaxes(params['f2_w'], 1, 2).astype(wdt)                        # (L, ff, d)

    out_w = jnp.pad(params['out_w'].T, ((0, 0), (0, F_pad - F))).astype(wdt)    # (d, F_pad)
    out_b = jnp.pad(params['out_b'].reshape(1, F),
                    ((0, 0), (0, F_pad - F))).astype(jnp.float32)               # (1, F_pad)

    def padrow(v, n):   # (L, n) -> (L, 1, W)
        return jnp.pad(jnp.asarray(v).reshape(L, 1, n), ((0, 0), (0, 0), (0, W - n)))

    pslab = jnp.concatenate([
        padrow(qkv_b, 3 * d),            # row 0
        padrow(params['ao_b'], d),       # row 1
        padrow(params['ln1_w'], d),      # row 2
        padrow(params['ln1_b'], d),      # row 3
        padrow(params['ln2_w'], d),      # row 4
        padrow(params['ln2_b'], d),      # row 5
        padrow(params['f1_b'], ffd),     # row 6
        padrow(params['f2_b'], d),       # row 7
    ], axis=1).astype(jnp.float32)       # (L, 8, W)

    return dict(meta=(S, F, F_pad, d, ffd, nhead, L), fast_math=fast_math,
                pos_b=pos_b, in_w=in_w_t, wqkv=wqkv, wo=wo, f1w=f1w, f2w=f2w,
                pslab=pslab, out_w=out_w, out_b=out_b)


def transformer_encoder_pallas(x, prep, *, tb=None):
    B, S, F = x.shape
    S_p, F_p, F_pad, d, ffd, nhead, L = prep['meta']
    assert (S, F) == (S_p, F_p), "input shape does not match prepared params"

    if tb is None:  # batch block size: prefer >=2 grid rows so both TCs (megacore) stay busy
        divs = [c for c in range(1, min(B, 8) + 1) if B % c == 0]
        good = [c for c in divs if B // c >= 2]
        tb = max(good) if good else max(divs)
    if B % tb != 0:
        raise ValueError(f"batch {B} must be divisible by tb={tb}")

    W = prep['pslab'].shape[-1]

    def const2(b, l): return (0, 0)
    def const3(b, l): return (0, 0, 0)
    def batch3(b, l): return (b, 0, 0)
    def layer3(b, l): return (l, 0, 0)

    in_specs = [
        pl.BlockSpec((tb, S, F), batch3),         # x
        pl.BlockSpec((1, S, d), const3),          # pos emb + input bias
        pl.BlockSpec((F, d), const2),             # input projection
        pl.BlockSpec((1, d, 3 * d), layer3),      # fused QKV weights   (streamed per layer)
        pl.BlockSpec((1, d, d), layer3),          # attn output weights (streamed per layer)
        pl.BlockSpec((1, d, ffd), layer3),        # FF1 weights         (streamed per layer)
        pl.BlockSpec((1, ffd, d), layer3),        # FF2 weights         (streamed per layer)
        pl.BlockSpec((1, 8, W), layer3),          # packed biases / LN params (one DMA per layer)
        pl.BlockSpec((d, F_pad), const2),         # output projection (lane-dense padded)
        pl.BlockSpec((1, F_pad), const2),         # output bias
    ]
    out_spec = pl.BlockSpec((tb, S, F_pad), batch3)

    kernel = functools.partial(_encoder_kernel, nhead=nhead, fast_math=prep['fast_math'])
    grid_spec = pltpu.PrefetchScalarGridSpec(
        num_scalar_prefetch=0,
        grid=(B // tb, L),
        in_specs=in_specs,
        out_specs=out_spec,
        scratch_shapes=[pltpu.VMEM((tb * S, d), jnp.float32)],  # resident activations per block
    )
    out_padded = pl.pallas_call(
        kernel,
        out_shape=jax.ShapeDtypeStruct((B, S, F_pad), x.dtype),
        grid_spec=grid_spec,
        compiler_params=pltpu.CompilerParams(
            dimension_semantics=("parallel", "arbitrary"),
            vmem_limit_bytes=_vmem_limit_bytes(),
        ),
    )(x, prep['pos_b'], prep['in_w'], prep['wqkv'], prep['wo'],
      prep['f1w'], prep['f2w'], prep['pslab'], prep['out_w'], prep['out_b'])
    return out_padded[..., :F]


def transformer_encoder_ref(x, params, *, num_layers, nhead):
    """Pure-JAX f32 reference mirroring the PyTorch module semantics (eval mode)."""
    h = jnp.einsum('bsf,df->bsd', x, params['in_w']) + params['in_b'][0]
    h = h + params['pos']
    d = h.shape[-1]
    hd = d // nhead
    scale = 1.0 / jnp.sqrt(jnp.float32(hd))
    for l in range(num_layers):
        qkv = jnp.einsum('bsd,ed->bse', h, params['qkv_w'][l]) + params['qkv_b'][l]
        q, k, v = qkv[..., :d], qkv[..., d:2 * d], qkv[..., 2 * d:]
        outs = []
        for hh in range(nhead):
            qh = q[..., hh * hd:(hh + 1) * hd]
            kh = k[..., hh * hd:(hh + 1) * hd]
            vh = v[..., hh * hd:(hh + 1) * hd]
            s = jnp.einsum('bqe,bke->bqk', qh, kh) * scale
            p = jax.nn.softmax(s, axis=-1)
            outs.append(jnp.einsum('bqk,bke->bqe', p, vh))
        attn = jnp.concatenate(outs, axis=-1)
        attn = jnp.einsum('bsd,ed->bse', attn, params['ao_w'][l]) + params['ao_b'][l]
        h = _layer_norm(h + attn, params['ln1_w'][l], params['ln1_b'][l])
        ff = jnp.einsum('bsd,fd->bsf', h, params['f1_w'][l]) + params['f1_b'][l]
        ff = jnp.maximum(ff, 0.0)
        ff = jnp.einsum('bsf,df->bsd', ff, params['f2_w'][l]) + params['f2_b'][l]
        h = _layer_norm(h + ff, params['ln2_w'][l], params['ln2_b'][l])
    return jnp.einsum('bsd,fd->bsf', h, params['out_w']) + params['out_b'][0]


def init_params(key, *, seq_len, n_features, d_model, nhead, dim_ff, num_layers):
    ks = jax.random.split(key, 12)
    sc = 0.05
    return {
        'pos':   sc * jax.random.normal(ks[0], (1, seq_len, d_model), jnp.float32),
        'in_w':  sc * jax.random.normal(ks[1], (d_model, n_features), jnp.float32),
        'in_b':  sc * jax.random.normal(ks[2], (1, d_model), jnp.float32),
        'qkv_w': sc * jax.random.normal(ks[3], (num_layers, 3 * d_model, d_model), jnp.float32),
        'qkv_b': sc * jax.random.normal(ks[4], (num_layers, 3 * d_model), jnp.float32),
        'ao_w':  sc * jax.random.normal(ks[5], (num_layers, d_model, d_model), jnp.float32),
        'ao_b':  sc * jax.random.normal(ks[6], (num_layers, d_model), jnp.float32),
        'ln1_w': jnp.ones((num_layers, d_model), jnp.float32),
        'ln1_b': jnp.zeros((num_layers, d_model), jnp.float32),
        'ln2_w': jnp.ones((num_layers, d_model), jnp.float32),
        'ln2_b': jnp.zeros((num_layers, d_model), jnp.float32),
        'f1_w':  sc * jax.random.normal(ks[7], (num_layers, dim_ff, d_model), jnp.float32),
        'f1_b':  sc * jax.random.normal(ks[8], (num_layers, dim_ff), jnp.float32),
        'f2_w':  sc * jax.random.normal(ks[9], (num_layers, d_model, dim_ff), jnp.float32),
        'f2_b':  sc * jax.random.normal(ks[10], (num_layers, d_model), jnp.float32),
        'out_w': sc * jax.random.normal(ks[11], (n_features, d_model), jnp.float32),
        'out_b': jnp.zeros((1, n_features), jnp.float32),
    }


if __name__ == "__main__":
    # Small shapes consistent with the module's forward pass.
    B, S, F = 2, 8, 4            # batch, seq_len, n_features
    D_MODEL, NHEAD, DIM_FF, NUM_LAYERS = 32, 4, 64, 2

    key = jax.random.PRNGKey(0)
    kx, kp = jax.random.split(key)
    x = jax.random.normal(kx, (B, S, F), jnp.float32)
    params = init_params(kp, seq_len=S, n_features=F, d_model=D_MODEL,
                         nhead=NHEAD, dim_ff=DIM_FF, num_layers=NUM_LAYERS)

    # TODO(synk): dropout (p=0.2) has no effect in eval mode and is implemented as identity.
    ref = transformer_encoder_ref(x, params, num_layers=NUM_LAYERS, nhead=NHEAD)

    # Exact path (f32 MXU inputs, exact reciprocal): tight semantic check; tb=1 and tb=2 paths.
    prep_f32 = prepare_params(params, num_layers=NUM_LAYERS, nhead=NHEAD, fast_math=False)
    out_f32 = jax.block_until_ready(transformer_encoder_pallas(x, prep_f32, tb=1))
    assert out_f32.shape == (B, S, F)
    assert jnp.allclose(out_f32, ref, atol=5e-4, rtol=5e-4), "f32 path (tb=1) mismatch"

    out_f32_tb2 = jax.block_until_ready(transformer_encoder_pallas(x, prep_f32, tb=2))
    assert jnp.allclose(out_f32_tb2, ref, atol=5e-4, rtol=5e-4), "f32 path (tb=2) mismatch"

    # Fast path (bf16 MXU inputs + approx softmax reciprocal, f32 stats/accumulation).
    prep_bf16 = prepare_params(params, num_layers=NUM_LAYERS, nhead=NHEAD, fast_math=True)
    out_fast = jax.block_until_ready(transformer_encoder_pallas(x, prep_bf16, tb=2))
    assert out_fast.shape == (B, S, F)
    assert jnp.allclose(out_fast, ref, atol=5e-2, rtol=5e-2), "bf16 path mismatch"

    print("KERNEL_OK")
</pallas_src>

<mosaic_0001>
module attributes {stable_mosaic.version = 11 : i64} {
  func.func @_encoder_kernel(%arg0: i32, %arg1: i32, %arg2: memref<1x8x4xf32, #tpu.memory_space<vmem>>, %arg3: memref<1x8x32xf32, #tpu.memory_space<vmem>>, %arg4: memref<4x32xf32, #tpu.memory_space<vmem>>, %arg5: memref<1x32x96xf32, #tpu.memory_space<vmem>>, %arg6: memref<1x32x32xf32, #tpu.memory_space<vmem>>, %arg7: memref<1x32x64xf32, #tpu.memory_space<vmem>>, %arg8: memref<1x64x32xf32, #tpu.memory_space<vmem>>, %arg9: memref<1x8x128xf32, #tpu.memory_space<vmem>>, %arg10: memref<32x128xf32, #tpu.memory_space<vmem>>, %arg11: memref<1x128xf32, #tpu.memory_space<vmem>>, %arg12: memref<1x8x128xf32, #tpu.memory_space<vmem>>, %arg13: memref<8x32xf32, #tpu.memory_space<vmem>>) attributes {dimension_semantics = [#tpu.dimension_semantics<parallel>, #tpu.dimension_semantics<arbitrary>], iteration_bounds = array<i64: 2, 2>, scalar_prefetch = 0 : i64, scratch_operands = 1 : i64, tpu.core_type = #tpu.core_type<tc>, window_params = [{transform_indices = @transform_0, window_bounds = array<i64: 1, 8, 4>}, {pipeline_mode = #tpu.pipeline_mode<synchronous>, transform_indices = @transform_1, window_bounds = array<i64: 1, 8, 32>}, {pipeline_mode = #tpu.pipeline_mode<synchronous>, transform_indices = @transform_2, window_bounds = array<i64: 4, 32>}, {transform_indices = @transform_3, window_bounds = array<i64: 1, 32, 96>}, {transform_indices = @transform_4, window_bounds = array<i64: 1, 32, 32>}, {transform_indices = @transform_5, window_bounds = array<i64: 1, 32, 64>}, {transform_indices = @transform_6, window_bounds = array<i64: 1, 64, 32>}, {transform_indices = @transform_7, window_bounds = array<i64: 1, 8, 128>}, {pipeline_mode = #tpu.pipeline_mode<synchronous>, transform_indices = @transform_8, window_bounds = array<i64: 32, 128>}, {pipeline_mode = #tpu.pipeline_mode<synchronous>, transform_indices = @transform_9, window_bounds = array<i64: 1, 128>}, {transform_indices = @transform_10, window_bounds = array<i64: 1, 8, 128>}]} {
    %c0_i32 = arith.constant 0 : i32
    %0 = arith.cmpi eq, %arg1, %c0_i32 : i32
    %1 = arith.extui %0 : i1 to i32
    %c0_i32_0 = arith.constant 0 : i32
    %2 = arith.cmpi ne, %1, %c0_i32_0 : i32
    scf.if %2 {
      %c0_38 = arith.constant 0 : index
      %c0_39 = arith.constant 0 : index
      %c0_40 = arith.constant 0 : index
      %137 = vector.load %arg2[%c0_38, %c0_39, %c0_40] : memref<1x8x4xf32, #tpu.memory_space<vmem>>, vector<1x8x4xf32>
      %138 = vector.shape_cast %137 : vector<1x8x4xf32> to vector<8x4xf32>
      %c0_41 = arith.constant 0 : index
      %c0_42 = arith.constant 0 : index
      %139 = vector.load %arg4[%c0_41, %c0_42] : memref<4x32xf32, #tpu.memory_space<vmem>>, vector<4x32xf32>
      %cst_43 = arith.constant dense<0.000000e+00> : vector<8x32xf32>
      %140 = tpu.matmul %138, %139, %cst_43 {dimension_numbers = #tpu.dot_dimension_numbers<[1], [0], [0], [1], [0, 0, 1, 1], [], []>} : vector<8x4xf32>, vector<4x32xf32>, vector<8x32xf32> -> vector<8x32xf32>
      %141 = vector.shape_cast %140 : vector<8x32xf32> to vector<1x8x32xf32>
      %c0_44 = arith.constant 0 : index
      %c0_45 = arith.constant 0 : index
      %c0_46 = arith.constant 0 : index
      %142 = vector.load %arg3[%c0_44, %c0_45, %c0_46] : memref<1x8x32xf32, #tpu.memory_space<vmem>>, vector<1x8x32xf32>
      %143 = vector.shape_cast %142 : vector<1x8x32xf32> to vector<8x32xf32>
      %144 = vector.shape_cast %143 : vector<8x32xf32> to vector<1x8x32xf32>
      %145 = arith.addf %141, %144 : vector<1x8x32xf32>
      %146 = vector.shape_cast %145 : vector<1x8x32xf32> to vector<8x32xf32>
      %c0_47 = arith.constant 0 : index
      %c0_48 = arith.constant 0 : index
      %147 = vector.load %arg13[%c0_47, %c0_48] : memref<8x32xf32, #tpu.memory_space<vmem>>, vector<8x32xf32>
      tpu.vector_store %arg13[%c0_47, %c0_48], %146 {strides = array<i32>} : memref<8x32xf32, #tpu.memory_space<vmem>>, vector<8x32xf32>,
    } else {
    }
    %c0 = arith.constant 0 : index
    %c0_1 = arith.constant 0 : index
    %3 = vector.load %arg13[%c0, %c0_1] : memref<8x32xf32, #tpu.memory_space<vmem>>, vector<8x32xf32>
    %c0_2 = arith.constant 0 : index
    %c0_3 = arith.constant 0 : index
    %c0_4 = arith.constant 0 : index
    %4 = vector.load %arg9[%c0_2, %c0_3, %c0_4] : memref<1x8x128xf32, #tpu.memory_space<vmem>>, vector<1x8x128xf32>
    %5 = vector.shape_cast %4 : vector<1x8x128xf32> to vector<8x128xf32>
    %c0_5 = arith.constant 0 : index
    %c0_6 = arith.constant 0 : index
    %c0_7 = arith.constant 0 : index
    %6 = vector.load %arg5[%c0_5, %c0_6, %c0_7] : memref<1x32x96xf32, #tpu.memory_space<vmem>>, vector<1x32x96xf32>
    %7 = vector.shape_cast %6 : vector<1x32x96xf32> to vector<32x96xf32>
    %cst = arith.constant dense<0.000000e+00> : vector<8x96xf32>
    %8 = tpu.matmul %3, %7, %cst {dimension_numbers = #tpu.dot_dimension_numbers<[1], [0], [0], [1], [0, 0, 1, 1], [], []>} : vector<8x32xf32>, vector<32x96xf32>, vector<8x96xf32> -> vector<8x96xf32>
    %9 = vector.extract_strided_slice %5 {offsets = [0, 0], sizes = [1, 96], strides = [1, 1]} : vector<8x128xf32> to vector<1x96xf32>
    %10 = vector.broadcast %9 : vector<1x96xf32> to vector<8x96xf32>
    %11 = arith.addf %8, %10 : vector<8x96xf32>
    %12 = vector.extract_strided_slice %11 {offsets = [0, 0], sizes = [8, 32], strides = [1, 1]} : vector<8x96xf32> to vector<8x32xf32>
    %13 = vector.extract_strided_slice %12 {offsets = [0, 0], sizes = [8, 8], strides = [1, 1]} : vector<8x32xf32> to vector<8x8xf32>
    %14 = vector.shape_cast %13 : vector<8x8xf32> to vector<1x8x8xf32>
    %15 = vector.extract_strided_slice %12 {offsets = [0, 8], sizes = [8, 8], strides = [1, 1]} : vector<8x32xf32> to vector<8x8xf32>
    %16 = vector.shape_cast %15 : vector<8x8xf32> to vector<1x8x8xf32>
    %17 = vector.extract_strided_slice %12 {offsets = [0, 16], sizes = [8, 8], strides = [1, 1]} : vector<8x32xf32> to vector<8x8xf32>
    %18 = vector.shape_cast %17 : vector<8x8xf32> to vector<1x8x8xf32>
    %19 = vector.extract_strided_slice %12 {offsets = [0, 24], sizes = [8, 8], strides = [1, 1]} : vector<8x32xf32> to vector<8x8xf32>
    %20 = vector.shape_cast %19 : vector<8x8xf32> to vector<1x8x8xf32>
    %21 = tpu.concatenate %14, %16, %18, %20 in 0 : vector<1x8x8xf32>, vector<1x8x8xf32>, vector<1x8x8xf32>, vector<1x8x8xf32> -> vector<4x8x8xf32>
    %22 = vector.extract_strided_slice %11 {offsets = [0, 32], sizes = [8, 32], strides = [1, 1]} : vector<8x96xf32> to vector<8x32xf32>
    %23 = vector.extract_strided_slice %22 {offsets = [0, 0], sizes = [8, 8], strides = [1, 1]} : vector<8x32xf32> to vector<8x8xf32>
    %24 = vector.shape_cast %23 : vector<8x8xf32> to vector<1x8x8xf32>
    %25 = vector.extract_strided_slice %22 {offsets = [0, 8], sizes = [8, 8], strides = [1, 1]} : vector<8x32xf32> to vector<8x8xf32>
    %26 = vector.shape_cast %25 : vector<8x8xf32> to vector<1x8x8xf32>
    %27 = vector.extract_strided_slice %22 {offsets = [0, 16], sizes = [8, 8], strides = [1, 1]} : vector<8x32xf32> to vector<8x8xf32>
    %28 = vector.shape_cast %27 : vector<8x8xf32> to vector<1x8x8xf32>
    %29 = vector.extract_strided_slice %22 {offsets = [0, 24], sizes = [8, 8], strides = [1, 1]} : vector<8x32xf32> to vector<8x8xf32>
    %30 = vector.shape_cast %29 : vector<8x8xf32> to vector<1x8x8xf32>
    %31 = tpu.concatenate %24, %26, %28, %30 in 0 : vector<1x8x8xf32>, vector<1x8x8xf32>, vector<1x8x8xf32>, vector<1x8x8xf32> -> vector<4x8x8xf32>
    %32 = vector.extract_strided_slice %11 {offsets = [0, 64], sizes = [8, 32], strides = [1, 1]} : vector<8x96xf32> to vector<8x32xf32>
    %33 = vector.extract_strided_slice %32 {offsets = [0, 0], sizes = [8, 8], strides = [1, 1]} : vector<8x32xf32> to vector<8x8xf32>
    %34 = vector.shape_cast %33 : vector<8x8xf32> to vector<1x8x8xf32>
    %35 = vector.extract_strided_slice %32 {offsets = [0, 8], sizes = [8, 8], strides = [1, 1]} : vector<8x32xf32> to vector<8x8xf32>
    %36 = vector.shape_cast %35 : vector<8x8xf32> to vector<1x8x8xf32>
    %37 = vector.extract_strided_slice %32 {offsets = [0, 16], sizes = [8, 8], strides = [1, 1]} : vector<8x32xf32> to vector<8x8xf32>
    %38 = vector.shape_cast %37 : vector<8x8xf32> to vector<1x8x8xf32>
    %39 = vector.extract_strided_slice %32 {offsets = [0, 24], sizes = [8, 8], strides = [1, 1]} : vector<8x32xf32> to vector<8x8xf32>
    %40 = vector.shape_cast %39 : vector<8x8xf32> to vector<1x8x8xf32>
    %41 = tpu.concatenate %34, %36, %38, %40 in 0 : vector<1x8x8xf32>, vector<1x8x8xf32>, vector<1x8x8xf32>, vector<1x8x8xf32> -> vector<4x8x8xf32>
    "tpu.trace_start"() <{level = 10 : i32, message = "bqe,bke->bqk"}> : () -> ()
    %cst_8 = arith.constant dense<0.000000e+00> : vector<4x8x8xf32>
    %42 = tpu.matmul %21, %31, %cst_8 {dimension_numbers = #tpu.dot_dimension_numbers<[2], [2], [1], [1], [0, 0, 0, 1, 1, 1], [0], [0]>} : vector<4x8x8xf32>, vector<4x8x8xf32>, vector<4x8x8xf32> -> vector<4x8x8xf32>
    "tpu.trace_stop"() : () -> ()
    %cst_9 = arith.constant dense<0xFF800000> : vector<4x8xf32>
    %43 = vector.multi_reduction <maximumf>, %42, %cst_9 [2] : vector<4x8x8xf32> to vector<4x8xf32>
    %44 = vector.shape_cast %43 : vector<4x8xf32> to vector<4x8x1xf32>
    %45 = vector.broadcast %44 : vector<4x8x1xf32> to vector<4x8x8xf32>
    %46 = arith.subf %42, %45 : vector<4x8x8xf32>
    %47 = math.exp %46 : vector<4x8x8xf32>
    %cst_10 = arith.constant dense<0.000000e+00> : vector<4x8xf32>
    %48 = vector.multi_reduction <add>, %47, %cst_10 [2] : vector<4x8x8xf32> to vector<4x8xf32>
    %49 = vector.shape_cast %48 : vector<4x8xf32> to vector<4x8x1xf32>
    "tpu.trace_start"() <{level = 10 : i32, message = "bqk,bke->bqe"}> : () -> ()
    %cst_11 = arith.constant dense<0.000000e+00> : vector<4x8x8xf32>
    %50 = tpu.matmul %47, %41, %cst_11 {dimension_numbers = #tpu.dot_dimension_numbers<[2], [1], [1], [2], [0, 0, 0, 1, 1, 2], [0], [0]>} : vector<4x8x8xf32>, vector<4x8x8xf32>, vector<4x8x8xf32> -> vector<4x8x8xf32>
    "tpu.trace_stop"() : () -> ()
    %51 = tpu.reciprocal %49 : vector<4x8x1xf32> -> vector<4x8x1xf32>
    %52 = vector.broadcast %51 : vector<4x8x1xf32> to vector<4x8x8xf32>
    %53 = arith.mulf %50, %52 : vector<4x8x8xf32>
    %54 = vector.extract_strided_slice %53 {offsets = [0, 0, 0], sizes = [1, 8, 8], strides = [1, 1, 1]} : vector<4x8x8xf32> to vector<1x8x8xf32>
    %55 = vector.shape_cast %54 : vector<1x8x8xf32> to vector<8x8xf32>
    %56 = vector.extract_strided_slice %53 {offsets = [1, 0, 0], sizes = [1, 8, 8], strides = [1, 1, 1]} : vector<4x8x8xf32> to vector<1x8x8xf32>
    %57 = vector.shape_cast %56 : vector<1x8x8xf32> to vector<8x8xf32>
    %58 = vector.extract_strided_slice %53 {offsets = [2, 0, 0], sizes = [1, 8, 8], strides = [1, 1, 1]} : vector<4x8x8xf32> to vector<1x8x8xf32>
    %59 = vector.shape_cast %58 : vector<1x8x8xf32> to vector<8x8xf32>
    %60 = vector.extract_strided_slice %53 {offsets = [3, 0, 0], sizes = [1, 8, 8], strides = [1, 1, 1]} : vector<4x8x8xf32> to vector<1x8x8xf32>
    %61 = vector.shape_cast %60 : vector<1x8x8xf32> to vector<8x8xf32>
    %62 = tpu.concatenate %55, %57, %59, %61 in 1 : vector<8x8xf32>, vector<8x8xf32>, vector<8x8xf32>, vector<8x8xf32> -> vector<8x32xf32>
    %c0_12 = arith.constant 0 : index
    %c0_13 = arith.constant 0 : index
    %c0_14 = arith.constant 0 : index
    %63 = vector.load %arg6[%c0_12, %c0_13, %c0_14] : memref<1x32x32xf32, #tpu.memory_space<vmem>>, vector<1x32x32xf32>
    %64 = vector.shape_cast %63 : vector<1x32x32xf32> to vector<32x32xf32>
    %cst_15 = arith.constant dense<0.000000e+00> : vector<8x32xf32>
    %65 = tpu.matmul %62, %64, %cst_15 {dimension_numbers = #tpu.dot_dimension_numbers<[1], [0], [0], [1], [0, 0, 1, 1], [], []>} : vector<8x32xf32>, vector<32x32xf32>, vector<8x32xf32> -> vector<8x32xf32>
    %66 = vector.extract_strided_slice %5 {offsets = [1, 0], sizes = [1, 32], strides = [1, 1]} : vector<8x128xf32> to vector<1x32xf32>
    %67 = vector.broadcast %66 : vector<1x32xf32> to vector<8x32xf32>
    %68 = arith.addf %65, %67 : vector<8x32xf32>
    %69 = arith.addf %3, %68 : vector<8x32xf32>
    %70 = vector.extract_strided_slice %5 {offsets = [2, 0], sizes = [1, 32], strides = [1, 1]} : vector<8x128xf32> to vector<1x32xf32>
    %71 = vector.extract_strided_slice %5 {offsets = [3, 0], sizes = [1, 32], strides = [1, 1]} : vector<8x128xf32> to vector<1x32xf32>
    %cst_16 = arith.constant dense<0.000000e+00> : vector<8xf32>
    %72 = vector.multi_reduction <add>, %69, %cst_16 [1] : vector<8x32xf32> to vector<8xf32>
    %73 = vector.shape_cast %72 : vector<8xf32> to vector<8x1xf32>
    %cst_17 = arith.constant 3.200000e+01 : f32
    %74 = vector.broadcast %cst_17 : f32 to vector<8x1xf32>
    %75 = arith.divf %73, %74 : vector<8x1xf32>
    %76 = vector.broadcast %75 : vector<8x1xf32> to vector<8x32xf32>
    %77 = arith.subf %69, %76 : vector<8x32xf32>
    %78 = arith.mulf %77, %77 : vector<8x32xf32>
    %cst_18 = arith.constant dense<0.000000e+00> : vector<8xf32>
    %79 = vector.multi_reduction <add>, %78, %cst_18 [1] : vector<8x32xf32> to vector<8xf32>
    %80 = vector.shape_cast %79 : vector<8xf32> to vector<8x1xf32>
    %cst_19 = arith.constant 3.200000e+01 : f32
    %81 = vector.broadcast %cst_19 : f32 to vector<8x1xf32>
    %82 = arith.divf %80, %81 : vector<8x1xf32>
    %83 = vector.broadcast %75 : vector<8x1xf32> to vector<8x32xf32>
    %84 = arith.subf %69, %83 : vector<8x32xf32>
    %cst_20 = arith.constant 9.99999974E-6 : f32
    %85 = vector.broadcast %cst_20 : f32 to vector<8x1xf32>
    %86 = arith.addf %82, %85 : vector<8x1xf32>
    %87 = math.rsqrt %86 : vector<8x1xf32>
    %88 = vector.broadcast %87 : vector<8x1xf32> to vector<8x32xf32>
    %89 = arith.mulf %84, %88 : vector<8x32xf32>
    %90 = vector.broadcast %70 : vector<1x32xf32> to vector<8x32xf32>
    %91 = arith.mulf %89, %90 : vector<8x32xf32>
    %92 = vector.broadcast %71 : vector<1x32xf32> to vector<8x32xf32>
    %93 = arith.addf %91, %92 : vector<8x32xf32>
    %c0_21 = arith.constant 0 : index
    %c0_22 = arith.constant 0 : index
    %c0_23 = arith.constant 0 : index
    %94 = vector.load %arg7[%c0_21, %c0_22, %c0_23] : memref<1x32x64xf32, #tpu.memory_space<vmem>>, vector<1x32x64xf32>
    %95 = vector.shape_cast %94 : vector<1x32x64xf32> to vector<32x64xf32>
    %cst_24 = arith.constant dense<0.000000e+00> : vector<8x64xf32>
    %96 = tpu.matmul %93, %95, %cst_24 {dimension_numbers = #tpu.dot_dimension_numbers<[1], [0], [0], [1], [0, 0, 1, 1], [], []>} : vector<8x32xf32>, vector<32x64xf32>, vector<8x64xf32> -> vector<8x64xf32>
    %97 = vector.extract_strided_slice %5 {offsets = [6, 0], sizes = [1, 64], strides = [1, 1]} : vector<8x128xf32> to vector<1x64xf32>
    %98 = vector.broadcast %97 : vector<1x64xf32> to vector<8x64xf32>
    %99 = arith.addf %96, %98 : vector<8x64xf32>
    %cst_25 = arith.constant 0.000000e+00 : f32
    %100 = vector.broadcast %cst_25 : f32 to vector<8x64xf32>
    %101 = arith.maximumf %99, %100 : vector<8x64xf32>
    %c0_26 = arith.constant 0 : index
    %c0_27 = arith.constant 0 : index
    %c0_28 = arith.constant 0 : index
    %102 = vector.load %arg8[%c0_26, %c0_27, %c0_28] : memref<1x64x32xf32, #tpu.memory_space<vmem>>, vector<1x64x32xf32>
    %103 = vector.shape_cast %102 : vector<1x64x32xf32> to vector<64x32xf32>
    %cst_29 = arith.constant dense<0.000000e+00> : vector<8x32xf32>
    %104 = tpu.matmul %101, %103, %cst_29 {dimension_numbers = #tpu.dot_dimension_numbers<[1], [0], [0], [1], [0, 0, 1, 1], [], []>} : vector<8x64xf32>, vector<64x32xf32>, vector<8x32xf32> -> vector<8x32xf32>
    %105 = vector.extract_strided_slice %5 {offsets = [7, 0], sizes = [1, 32], strides = [1, 1]} : vector<8x128xf32> to vector<1x32xf32>
    %106 = vector.broadcast %105 : vector<1x32xf32> to vector<8x32xf32>
    %107 = arith.addf %104, %106 : vector<8x32xf32>
    %108 = arith.addf %93, %107 : vector<8x32xf32>
    %109 = vector.extract_strided_slice %5 {offsets = [4, 0], sizes = [1, 32], strides = [1, 1]} : vector<8x128xf32> to vector<1x32xf32>
    %110 = vector.extract_strided_slice %5 {offsets = [5, 0], sizes = [1, 32], strides = [1, 1]} : vector<8x128xf32> to vector<1x32xf32>
    %cst_30 = arith.constant dense<0.000000e+00> : vector<8xf32>
    %111 = vector.multi_reduction <add>, %108, %cst_30 [1] : vector<8x32xf32> to vector<8xf32>
    %112 = vector.shape_cast %111 : vector<8xf32> to vector<8x1xf32>
    %cst_31 = arith.constant 3.200000e+01 : f32
    %113 = vector.broadcast %cst_31 : f32 to vector<8x1xf32>
    %114 = arith.divf %112, %113 : vector<8x1xf32>
    %115 = vector.broadcast %114 : vector<8x1xf32> to vector<8x32xf32>
    %116 = arith.subf %108, %115 : vector<8x32xf32>
    %117 = arith.mulf %116, %116 : vector<8x32xf32>
    %cst_32 = arith.constant dense<0.000000e+00> : vector<8xf32>
    %118 = vector.multi_reduction <add>, %117, %cst_32 [1] : vector<8x32xf32> to vector<8xf32>
    %119 = vector.shape_cast %118 : vector<8xf32> to vector<8x1xf32>
    %cst_33 = arith.constant 3.200000e+01 : f32
    %120 = vector.broadcast %cst_33 : f32 to vector<8x1xf32>
    %121 = arith.divf %119, %120 : vector<8x1xf32>
    %122 = vector.broadcast %114 : vector<8x1xf32> to vector<8x32xf32>
    %123 = arith.subf %108, %122 : vector<8x32xf32>
    %cst_34 = arith.constant 9.99999974E-6 : f32
    %124 = vector.broadcast %cst_34 : f32 to vector<8x1xf32>
    %125 = arith.addf %121, %124 : vector<8x1xf32>
    %126 = math.rsqrt %125 : vector<8x1xf32>
    %127 = vector.broadcast %126 : vector<8x1xf32> to vector<8x32xf32>
    %128 = arith.mulf %123, %127 : vector<8x32xf32>
    %129 = vector.broadcast %109 : vector<1x32xf32> to vector<8x32xf32>
    %130 = arith.mulf %128, %129 : vector<8x32xf32>
    %131 = vector.broadcast %110 : vector<1x32xf32> to vector<8x32xf32>
    %132 = arith.addf %130, %131 : vector<8x32xf32>
    %c0_35 = arith.constant 0 : index
    %c0_36 = arith.constant 0 : index
    %133 = vector.load %arg13[%c0_35, %c0_36] : memref<8x32xf32, #tpu.memory_space<vmem>>, vector<8x32xf32>
    tpu.vector_store %arg13[%c0_35, %c0_36], %132 {strides = array<i32>} : memref<8x32xf32, #tpu.memory_space<vmem>>, vector<8x32xf32>,
    %c1_i32 = arith.constant 1 : i32
    %134 = arith.cmpi eq, %arg1, %c1_i32 : i32
    %135 = arith.extui %134 : i1 to i32
    %c0_i32_37 = arith.constant 0 : i32
    %136 = arith.cmpi ne, %135, %c0_i32_37 : i32
    scf.if %136 {
      %c0_38 = arith.constant 0 : index
      %c0_39 = arith.constant 0 : index
      %137 = vector.load %arg10[%c0_38, %c0_39] : memref<32x128xf32, #tpu.memory_space<vmem>>, vector<32x128xf32>
      %cst_40 = arith.constant dense<0.000000e+00> : vector<8x128xf32>
      %138 = tpu.matmul %132, %137, %cst_40 {dimension_numbers = #tpu.dot_dimension_numbers<[1], [0], [0], [1], [0, 0, 1, 1], [], []>} : vector<8x32xf32>, vector<32x128xf32>, vector<8x128xf32> -> vector<8x128xf32>
      %c0_41 = arith.constant 0 : index
      %c0_42 = arith.constant 0 : index
      %139 = vector.load %arg11[%c0_41, %c0_42] : memref<1x128xf32, #tpu.memory_space<vmem>>, vector<1x128xf32>
      %140 = vector.broadcast %139 : vector<1x128xf32> to vector<8x128xf32>
      %141 = arith.addf %138, %140 : vector<8x128xf32>
      %142 = vector.shape_cast %141 : vector<8x128xf32> to vector<1x8x128xf32>
      %c0_43 = arith.constant 0 : index
      %c0_44 = arith.constant 0 : index
      %c0_45 = arith.constant 0 : index
      %143 = vector.load %arg12[%c0_43, %c0_44, %c0_45] : memref<1x8x128xf32, #tpu.memory_space<vmem>>, vector<1x8x128xf32>
      tpu.vector_store %arg12[%c0_43, %c0_44, %c0_45], %142 {strides = array<i32>} : memref<1x8x128xf32, #tpu.memory_space<vmem>>, vector<1x8x128xf32>,
    } else {
    }
    return
  }
  func.func @transform_0(%arg0: i32, %arg1: i32) -> (i32, i32, i32) {
    %c0_i32 = arith.constant 0 : i32
    %c0_i32_0 = arith.constant 0 : i32
    %c0_i32_1 = arith.constant 0 : i32
    return %arg0, %c0_i32, %c0_i32_0 : i32, i32, i32
  }
  func.func @transform_1(%arg0: i32, %arg1: i32) -> (i32, i32, i32) {
    %c0_i32 = arith.constant 0 : i32
    %c0_i32_0 = arith.constant 0 : i32
    %c0_i32_1 = arith.constant 0 : i32
    %c0_i32_2 = arith.constant 0 : i32
    return %c0_i32, %c0_i32_0, %c0_i32_1 : i32, i32, i32
  }
  func.func @transform_2(%arg0: i32, %arg1: i32) -> (i32, i32) {
    %c0_i32 = arith.constant 0 : i32
    %c0_i32_0 = arith.constant 0 : i32
    %c0_i32_1 = arith.constant 0 : i32
    return %c0_i32, %c0_i32_0 : i32, i32
  }
  func.func @transform_3(%arg0: i32, %arg1: i32) -> (i32, i32, i32) {
    %c0_i32 = arith.constant 0 : i32
    %c0_i32_0 = arith.constant 0 : i32
    %c0_i32_1 = arith.constant 0 : i32
    return %arg1, %c0_i32, %c0_i32_0 : i32, i32, i32
  }
  func.func @transform_4(%arg0: i32, %arg1: i32) -> (i32, i32, i32) {
    %c0_i32 = arith.constant 0 : i32
    %c0_i32_0 = arith.constant 0 : i32
    %c0_i32_1 = arith.constant 0 : i32
    return %arg1, %c0_i32, %c0_i32_0 : i32, i32, i32
  }
  func.func @transform_5(%arg0: i32, %arg1: i32) -> (i32, i32, i32) {
    %c0_i32 = arith.constant 0 : i32
    %c0_i32_0 = arith.constant 0 : i32
    %c0_i32_1 = arith.constant 0 : i32
    return %arg1, %c0_i32, %c0_i32_0 : i32, i32, i32
  }
  func.func @transform_6(%arg0: i32, %arg1: i32) -> (i32, i32, i32) {
    %c0_i32 = arith.constant 0 : i32
    %c0_i32_0 = arith.constant 0 : i32
    %c0_i32_1 = arith.constant 0 : i32
    return %arg1, %c0_i32, %c0_i32_0 : i32, i32, i32
  }
  func.func @transform_7(%arg0: i32, %arg1: i32) -> (i32, i32, i32) {
    %c0_i32 = arith.constant 0 : i32
    %c0_i32_0 = arith.constant 0 : i32
    %c0_i32_1 = arith.constant 0 : i32
    return %arg1, %c0_i32, %c0_i32_0 : i32, i32, i32
  }
  func.func @transform_8(%arg0: i32, %arg1: i32) -> (i32, i32) {
    %c0_i32 = arith.constant 0 : i32
    %c0_i32_0 = arith.constant 0 : i32
    %c0_i32_1 = arith.constant 0 : i32
    return %c0_i32, %c0_i32_0 : i32, i32
  }
  func.func @transform_9(%arg0: i32, %arg1: i32) -> (i32, i32) {
    %c0_i32 = arith.constant 0 : i32
    %c0_i32_0 = arith.constant 0 : i32
    %c0_i32_1 = arith.constant 0 : i32
    return %c0_i32, %c0_i32_0 : i32, i32
  }
  func.func @transform_10(%arg0: i32, %arg1: i32) -> (i32, i32, i32) {
    %c0_i32 = arith.constant 0 : i32
    %c0_i32_0 = arith.constant 0 : i32
    %c0_i32_1 = arith.constant 0 : i32
    return %arg0, %c0_i32, %c0_i32_0 : i32, i32, i32
  }
}

</mosaic_0001>

<llo_original>
// kernel: tpu_custom_call.1
$region0: #{tpu_custom_call.1}
  #allocation0 [shape = 'u32[]', space=smem, size = 0x4, offset = 0x4, fixed_abs, tag = 'smem constant byte address 0x4 - core index']
  #allocation1 [shape = 'u32[144,128]{1,0:T(1,128)}', space=vmem, size = 0x12000, scoped, tag = 'internal scratch']
  #allocation2 [shape = 'f32[8,32]{1,0:T(8,128)}', space=vmem, size = 0x1000, scoped, tag = 'scratch operand']
  %s0 = inlined_call_operand.vmem [shape: f32[2,8,4], index: 0, kind: input, shape index: {}]
  %s1 = inlined_call_operand.hbm [shape: f32[1,8,32], index: 1, kind: input, shape index: {}]
  %s2 = inlined_call_operand.hbm [shape: f32[4,32], index: 2, kind: input, shape index: {}]
  %s3 = inlined_call_operand.vmem [shape: f32[2,32,96], index: 3, kind: input, shape index: {}]
  %s4 = inlined_call_operand.vmem [shape: f32[2,32,32], index: 4, kind: input, shape index: {}]
  %s5 = inlined_call_operand.vmem [shape: f32[2,32,64], index: 5, kind: input, shape index: {}]
  %s6 = inlined_call_operand.vmem [shape: f32[2,64,32], index: 6, kind: input, shape index: {}]
  %s7 = inlined_call_operand.hbm [shape: f32[2,8,128], index: 7, kind: input, shape index: {}]
  %s8 = inlined_call_operand.vmem [shape: f32[32,128], index: 8, kind: input, shape index: {}]
  %s9 = inlined_call_operand.vmem [shape: f32[1,128], index: 9, kind: input, shape index: {}]
  %s10 = inlined_call_operand.hbm [shape: f32[2,8,128], index: 10, kind: output, shape index: {}]
  %s11 = sld [smem:[#allocation0]]
  $region93: #{tpu_custom_call.1} parent=0
    _
  %s13 = ssub.s32 1, %s11
  %s14 = scalar_select 0, %s13, %s11
  $region1: #{tpu_custom_call.1} parent=0
    #allocation3 [shape = 'u8[4096]{0}', space=vmem, size = 0x1000, scoped, tag = 'input window, operand 1, single buffered']
    #allocation4 [shape = 's32[2]{0}', space=sflag, size = 0x8, scoped, tag = 'scoped memory for tpu_custom_call.1']
    #allocation5 [shape = 's32[2]{0}', space=sflag, size = 0x8, scoped, tag = 'scoped memory for tpu_custom_call.1']
    #allocation6 [shape = 'u8[2048]{0}', space=vmem, size = 0x800, scoped, tag = 'input window, operand 2, single buffered']
    #allocation7 [shape = 's32[1]{0}', space=sflag, size = 0x4, scoped, tag = 'scoped memory for tpu_custom_call.1']
    #allocation8 [shape = 'u8[8192]{0}', space=vmem, size = 0x2000, scoped, tag = 'input window, operand 7']
    #allocation9 [shape = 'u8[8192]{0}', space=vmem, size = 0x2000, scoped, tag = 'output window, operand 0']
    %15 = vsyncpa [#allocation4], 0
    %16 = vsyncpa [#allocation7], 0
    %17 = vsyncpa [#allocation5], 0
    %s18 = scalar_lea.sflag [#allocation5], 1
    %19 = vsyncpa %s18, 0
    loop: start=0, step=1, limit=6
    $region2: #{tpu_custom_call.1} parent=1 // loop_pre_header
      _
    $region3: #{tpu_custom_call.1} parent=1 // loop_header
      %s21 = sphi 0, %s25
      %p22 = scmp.ge.s32.totalorder %s21, 6
      %s28 = sphi 0, %s40
      %s29 = sphi 0, %s36
      %s30 = sphi 0, %s28
      %s31 = sphi 0, %s29
      %s32 = sphi 0, %s30
      %s33 = sphi 0, %s31
      %s43 = sphi 0, %s45
      %s46 = sphi 0, %s43
      %s47 = sphi 0, %s46
      %s63 = sphi 0, %s47
      %s67 = sphi 0, %s67
      %s69 = sphi 0, %s67
      %s70 = sphi 0, %s69
      %s84 = sphi 0, %s70
      %s88 = sphi 0, %s88
      %s90 = sphi 0, %s88
      %s91 = sphi 0, %s90
      %s105 = sphi 0, %s91
      %s111 = sphi 0, %s113
      %s114 = sphi 0, %s111
      %s115 = sphi 0, %s114
      %s131 = sphi 0, %s115
      %s137 = sphi 0, %s139
      %s140 = sphi 0, %s137
      %s141 = sphi 0, %s140
      %s157 = sphi 0, %s141
      %s163 = sphi 0, %s165
      %s166 = sphi 0, %s163
      %s167 = sphi 0, %s166
      %s183 = sphi 0, %s167
      %s189 = sphi 0, %s191
      %s192 = sphi 0, %s189
      %s193 = sphi 0, %s192
      %s209 = sphi 0, %s193
      %s215 = sphi 0, %s217
      %s218 = sphi 0, %s215
      %s219 = sphi 0, %s218
      %s235 = sphi 0, %s219
      %s239 = sphi 0, %s239
      %s241 = sphi 0, %s239
      %s242 = sphi 0, %s241
      %s256 = sphi 0, %s242
      %s260 = sphi 0, %s260
      %s262 = sphi 0, %s260
      %s263 = sphi 0, %s262
      %s277 = sphi 0, %s263
      %s283 = sphi 0, %s285
      %s286 = sphi 0, %s283
      %s287 = sphi 0, %s286
      %s303 = sphi 0, %s287
    $region4: #{tpu_custom_call.1} parent=1 // loop_header_branch
      %24 = sbr.rel (%p22) target = $region8
    $region5: #{tpu_custom_call.1} parent=1 // loop_body
      %s26 = ssub.s32 %s21, 1
      %s27 = ssub.s32 %s21, 2
      %s34 = sadd.s32 1, %s29
      %p35 = scmp.ge.s32.totalorder %s34, 2
      %s36 = scalar_select %p35, 0, %s34
      %s37 = sadd.s32 1, %s28
      %s38 = scalar_select %p35, %s37, %s28
      %p39 = scmp.ge.s32.totalorder %s38, 2
      %s40 = scalar_select %p39, 0, %s38
      %s41 = ssub.s32 %s28, %s40
      %p42 = scmp.eq.s32.totalorder %s41, 0
      %s44 = sadd.s32 %s43, 1
      %s45 = scalar_select %p42, %s43, %s44
      %p48 = pneg %p42
      %p49 = scmp.eq.s32.totalorder %s21, 3
      %p50 = por %p48, %p49
      %p51 = scmp.ne.s32.totalorder %s43, %s46
      %p52 = scmp.eq.s32.totalorder %s21, 0
      %p53 = por %p51, %p52
      %p54 = scmp.ne.s32.totalorder %s43, %s46
      %p55 = scmp.eq.s32.totalorder %s26, 3
      %p56 = por %p54, %p55
      %p57 = scmp.ne.s32.totalorder %s46, %s47
      %p58 = scmp.eq.s32.totalorder %s26, 0
      %p59 = por %p57, %p58
      %p60 = scmp.ne.s32.totalorder %s46, %s47
      %p61 = scmp.eq.s32.totalorder %s27, 3
      %p62 = por %p60, %p61
      %p64 = scmp.ne.s32.totalorder %s47, %s63
      %p65 = scmp.eq.s32.totalorder %s27, 0
      %p66 = por %p64, %p65
      %s68 = sadd.s32 %s67, 1
      %p71 = scmp.eq.s32.totalorder %s21, 3
      %p72 = scmp.ne.s32.totalorder %s67, %s69
      %p73 = scmp.eq.s32.totalorder %s21, 0
      %p74 = por %p72, %p73
      %p75 = scmp.ne.s32.totalorder %s67, %s69
      %p76 = scmp.eq.s32.totalorder %s26, 3
      %p77 = por %p75, %p76
      %p78 = scmp.ne.s32.totalorder %s69, %s70
      %p79 = scmp.eq.s32.totalorder %s26, 0
      %p80 = por %p78, %p79
      %p81 = scmp.ne.s32.totalorder %s69, %s70
      %p82 = scmp.eq.s32.totalorder %s27, 3
      %p83 = por %p81, %p82
      %p85 = scmp.ne.s32.totalorder %s70, %s84
      %p86 = scmp.eq.s32.totalorder %s27, 0
      %p87 = por %p85, %p86
      %s89 = sadd.s32 %s88, 1
      %p92 = scmp.eq.s32.totalorder %s21, 3
      %p93 = scmp.ne.s32.totalorder %s88, %s90
      %p94 = scmp.eq.s32.totalorder %s21, 0
      %p95 = por %p93, %p94
      %p96 = scmp.ne.s32.totalorder %s88, %s90
      %p97 = scmp.eq.s32.totalorder %s26, 3
      %p98 = por %p96, %p97
      %p99 = scmp.ne.s32.totalorder %s90, %s91
      %p100 = scmp.eq.s32.totalorder %s26, 0
      %p101 = por %p99, %p100
      %p102 = scmp.ne.s32.totalorder %s90, %s91
      %p103 = scmp.eq.s32.totalorder %s27, 3
      %p104 = por %p102, %p103
      %p106 = scmp.ne.s32.totalorder %s91, %s105
      %p107 = scmp.eq.s32.totalorder %s27, 0
      %p108 = por %p106, %p107
      %s109 = ssub.s32 %s29, %s36
      %p110 = scmp.eq.s32.totalorder %s109, 0
      %s112 = sadd.s32 %s111, 1
      %s113 = scalar_select %p110, %s111, %s112
      %p116 = pneg %p110
      %p117 = scmp.eq.s32.totalorder %s21, 3
      %p118 = por %p116, %p117
      %p119 = scmp.ne.s32.totalorder %s111, %s114
      %p120 = scmp.eq.s32.totalorder %s21, 0
      %p121 = por %p119, %p120
      %p122 = scmp.ne.s32.totalorder %s111, %s114
      %p123 = scmp.eq.s32.totalorder %s26, 3
      %p124 = por %p122, %p123
      %p125 = scmp.ne.s32.totalorder %s114, %s115
      %p126 = scmp.eq.s32.totalorder %s26, 0
      %p127 = por %p125, %p126
      %p128 = scmp.ne.s32.totalorder %s114, %s115
      %p129 = scmp.eq.s32.totalorder %s27, 3
      %p130 = por %p128, %p129
      %p132 = scmp.ne.s32.totalorder %s115, %s131
      %p133 = scmp.eq.s32.totalorder %s27, 0
      %p134 = por %p132, %p133
      %s135 = ssub.s32 %s29, %s36
      %p136 = scmp.eq.s32.totalorder %s135, 0
      %s138 = sadd.s32 %s137, 1
      %s139 = scalar_select %p136, %s137, %s138
      %p142 = pneg %p136
      %p143 = scmp.eq.s32.totalorder %s21, 3
      %p144 = por %p142, %p143
      %p145 = scmp.ne.s32.totalorder %s137, %s140
      %p146 = scmp.eq.s32.totalorder %s21, 0
      %p147 = por %p145, %p146
      %p148 = scmp.ne.s32.totalorder %s137, %s140
      %p149 = scmp.eq.s32.totalorder %s26, 3
      %p150 = por %p148, %p149
      %p151 = scmp.ne.s32.totalorder %s140, %s141
      %p152 = scmp.eq.s32.totalorder %s26, 0
      %p153 = por %p151, %p152
      %p154 = scmp.ne.s32.totalorder %s140, %s141
      %p155 = scmp.eq.s32.totalorder %s27, 3
      %p156 = por %p154, %p155
      %p158 = scmp.ne.s32.totalorder %s141, %s157
      %p159 = scmp.eq.s32.totalorder %s27, 0
      %p160 = por %p158, %p159
      %s161 = ssub.s32 %s29, %s36
      %p162 = scmp.eq.s32.totalorder %s161, 0
      %s164 = sadd.s32 %s163, 1
      %s165 = scalar_select %p162, %s163, %s164
      %p168 = pneg %p162
      %p169 = scmp.eq.s32.totalorder %s21, 3
      %p170 = por %p168, %p169
      %p171 = scmp.ne.s32.totalorder %s163, %s166
      %p172 = scmp.eq.s32.totalorder %s21, 0
      %p173 = por %p171, %p172
      %p174 = scmp.ne.s32.totalorder %s163, %s166
      %p175 = scmp.eq.s32.totalorder %s26, 3
      %p176 = por %p174, %p175
      %p177 = scmp.ne.s32.totalorder %s166, %s167
      %p178 = scmp.eq.s32.totalorder %s26, 0
      %p179 = por %p177, %p178
      %p180 = scmp.ne.s32.totalorder %s166, %s167
      %p181 = scmp.eq.s32.totalorder %s27, 3
      %p182 = por %p180, %p181
      %p184 = scmp.ne.s32.totalorder %s167, %s183
      %p185 = scmp.eq.s32.totalorder %s27, 0
      %p186 = por %p184, %p185
      %s187 = ssub.s32 %s29, %s36
      %p188 = scmp.eq.s32.totalorder %s187, 0
      %s190 = sadd.s32 %s189, 1
      %s191 = scalar_select %p188, %s189, %s190
      %p194 = pneg %p188
      %p195 = scmp.eq.s32.totalorder %s21, 3
      %p196 = por %p194, %p195
      %p197 = scmp.ne.s32.totalorder %s189, %s192
      %p198 = scmp.eq.s32.totalorder %s21, 0
      %p199 = por %p197, %p198
      %p200 = scmp.ne.s32.totalorder %s189, %s192
      %p201 = scmp.eq.s32.totalorder %s26, 3
      %p202 = por %p200, %p201
      %p203 = scmp.ne.s32.totalorder %s192, %s193
      %p204 = scmp.eq.s32.totalorder %s26, 0
      %p205 = por %p203, %p204
      %p206 = scmp.ne.s32.totalorder %s192, %s193
      %p207 = scmp.eq.s32.totalorder %s27, 3
      %p208 = por %p206, %p207
      %p210 = scmp.ne.s32.totalorder %s193, %s209
      %p211 = scmp.eq.s32.totalorder %s27, 0
      %p212 = por %p210, %p211
      %s213 = ssub.s32 %s29, %s36
      %p214 = scmp.eq.s32.totalorder %s213, 0
      %s216 = sadd.s32 %s215, 1
      %s217 = scalar_select %p214, %s215, %s216
      %p220 = pneg %p214
      %p221 = scmp.eq.s32.totalorder %s21, 3
      %p222 = por %p220, %p221
      %p223 = scmp.ne.s32.totalorder %s215, %s218
      %p224 = scmp.eq.s32.totalorder %s21, 0
      %p225 = por %p223, %p224
      %p226 = scmp.ne.s32.totalorder %s215, %s218
      %p227 = scmp.eq.s32.totalorder %s26, 3
      %p228 = por %p226, %p227
      %p229 = scmp.ne.s32.totalorder %s218, %s219
      %p230 = scmp.eq.s32.totalorder %s26, 0
      %p231 = por %p229, %p230
      %p232 = scmp.ne.s32.totalorder %s218, %s219
      %p233 = scmp.eq.s32.totalorder %s27, 3
      %p234 = por %p232, %p233
      %p236 = scmp.ne.s32.totalorder %s219, %s235
      %p237 = scmp.eq.s32.totalorder %s27, 0
      %p238 = por %p236, %p237
      %s240 = sadd.s32 %s239, 1
      %p243 = scmp.eq.s32.totalorder %s21, 3
      %p244 = scmp.ne.s32.totalorder %s239, %s241
      %p245 = scmp.eq.s32.totalorder %s21, 0
      %p246 = por %p244, %p245
      %p247 = scmp.ne.s32.totalorder %s239, %s241
      %p248 = scmp.eq.s32.totalorder %s26, 3
      %p249 = por %p247, %p248
      %p250 = scmp.ne.s32.totalorder %s241, %s242
      %p251 = scmp.eq.s32.totalorder %s26, 0
      %p252 = por %p250, %p251
      %p253 = scmp.ne.s32.totalorder %s241, %s242
      %p254 = scmp.eq.s32.totalorder %s27, 3
      %p255 = por %p253, %p254
      %p257 = scmp.ne.s32.totalorder %s242, %s256
      %p258 = scmp.eq.s32.totalorder %s27, 0
      %p259 = por %p257, %p258
      %s261 = sadd.s32 %s260, 1
      %p264 = scmp.eq.s32.totalorder %s21, 3
      %p265 = scmp.ne.s32.totalorder %s260, %s262
      %p266 = scmp.eq.s32.totalorder %s21, 0
      %p267 = por %p265, %p266
      %p268 = scmp.ne.s32.totalorder %s260, %s262
      %p269 = scmp.eq.s32.totalorder %s26, 3
      %p270 = por %p268, %p269
      %p271 = scmp.ne.s32.totalorder %s262, %s263
      %p272 = scmp.eq.s32.totalorder %s26, 0
      %p273 = por %p271, %p272
      %p274 = scmp.ne.s32.totalorder %s262, %s263
      %p275 = scmp.eq.s32.totalorder %s27, 3
      %p276 = por %p274, %p275
      %p278 = scmp.ne.s32.totalorder %s263, %s277
      %p279 = scmp.eq.s32.totalorder %s27, 0
      %p280 = por %p278, %p279
      %s281 = ssub.s32 %s28, %s40
      %p282 = scmp.eq.s32.totalorder %s281, 0
      %s284 = sadd.s32 %s283, 1
      %s285 = scalar_select %p282, %s283, %s284
      %p288 = pneg %p282
      %p289 = scmp.eq.s32.totalorder %s21, 3
      %p290 = por %p288, %p289
      %p291 = scmp.ne.s32.totalorder %s283, %s286
      %p292 = scmp.eq.s32.totalorder %s21, 0
      %p293 = por %p291, %p292
      %p294 = scmp.ne.s32.totalorder %s283, %s286
      %p295 = scmp.eq.s32.totalorder %s26, 3
      %p296 = por %p294, %p295
      %p297 = scmp.ne.s32.totalorder %s286, %s287
      %p298 = scmp.eq.s32.totalorder %s26, 0
      %p299 = por %p297, %p298
      %p300 = scmp.ne.s32.totalorder %s286, %s287
      %p301 = scmp.eq.s32.totalorder %s27, 3
      %p302 = por %p300, %p301
      %p304 = scmp.ne.s32.totalorder %s287, %s303
      %p305 = scmp.eq.s32.totalorder %s27, 0
      %p306 = por %p304, %p305
      %p307 = scmp.le.s32.totalorder 1, %s21
      %p308 = scmp.lt.s32.totalorder %s21, 5
      %p309 = pnand %p307, %p308
      %p310 = pneg %p309
      // Predicated region
      $region9: #{tpu_custom_call.1} parent=5 // pred_check
        _
      $region10: #{tpu_custom_call.1} parent=5 // pred_check_branch
        %312 = sbr.rel (%p309) target = $region12
      $region11: #{tpu_custom_call.1} parent=5 // pred_region
        %s313 = ssub.s32 %s21, 1
        // Predicated region
        $region13: #{tpu_custom_call.1} parent=11 // pred_check
          %p314 = pneg %p80
        $region14: #{tpu_custom_call.1} parent=11 // pred_check_branch
          %316 = sbr.rel (%p314) target = $region16
        $region15: #{tpu_custom_call.1} parent=11 // pred_region
          %s318 = ssub.s32 128, 128
          %319 = vsyncadd [#allocation4], %s318
          %s321 = sshll.u32 [#allocation3], 4
          %s322 = int_to_ptr.vmem [resolvable:$true] %s321
          %324 = dma.hbm_to_vmem [thread:$0]  %s1, 128, %s322, [#allocation4]
        $region16: #{tpu_custom_call.1} parent=11 // pred_fallthru
          _
        // Predicated region
        $region17: #{tpu_custom_call.1} parent=11 // pred_check
          %p325 = pneg %p101
        $region18: #{tpu_custom_call.1} parent=11 // pred_check_branch
          %327 = sbr.rel (%p325) target = $region20
        $region19: #{tpu_custom_call.1} parent=11 // pred_region
          %s329 = ssub.s32 64, 64
          %330 = vsyncadd [#allocation7], %s329
          %s332 = sshll.u32 [#allocation6], 4
          %s333 = int_to_ptr.vmem [resolvable:$true] %s332
          %335 = dma.hbm_to_vmem [thread:$0]  %s2, 64, %s333, [#allocation7]
        $region20: #{tpu_custom_call.1} parent=11 // pred_fallthru
          _
        // Predicated region
        $region21: #{tpu_custom_call.1} parent=11 // pred_check
          %p336 = pneg %p252
        $region22: #{tpu_custom_call.1} parent=11 // pred_check_branch
          %338 = sbr.rel (%p336) target = $region24
        $region23: #{tpu_custom_call.1} parent=11 // pred_region
          _
        $region24: #{tpu_custom_call.1} parent=11 // pred_fallthru
          _
        // Predicated region
        $region25: #{tpu_custom_call.1} parent=11 // pred_check
          %p339 = pneg %p273
        $region26: #{tpu_custom_call.1} parent=11 // pred_check_branch
          %341 = sbr.rel (%p339) target = $region28
        $region27: #{tpu_custom_call.1} parent=11 // pred_region
          _
        $region28: #{tpu_custom_call.1} parent=11 // pred_fallthru
          _
      $region12: #{tpu_custom_call.1} parent=5 // pred_fallthru
        _
      %p342 = scmp.lt.s32.totalorder %s21, 4
      // Predicated region
      $region29: #{tpu_custom_call.1} parent=5 // pred_check
        %p343 = pneg %p342
      $region30: #{tpu_custom_call.1} parent=5 // pred_check_branch
        %345 = sbr.rel (%p343) target = $region32
      $region31: #{tpu_custom_call.1} parent=5 // pred_region
        // Predicated region
        $region33: #{tpu_custom_call.1} parent=31 // pred_check
          %p346 = pneg %p53
        $region34: #{tpu_custom_call.1} parent=31 // pred_check_branch
          %348 = sbr.rel (%p346) target = $region36
        $region35: #{tpu_custom_call.1} parent=31 // pred_region
          %p349 = scmp.lt.s32.totalorder %s28, 1
          %s350 = scalar_select %p349, %s28, 1
          %s351 = smul.addr %s350, 8
          %s352 = scalar_lea.vmem %s0, %s351
        $region36: #{tpu_custom_call.1} parent=31 // pred_fallthru
          _
        // Predicated region
        $region37: #{tpu_custom_call.1} parent=31 // pred_check
          %p353 = pneg %p121
        $region38: #{tpu_custom_call.1} parent=31 // pred_check_branch
          %355 = sbr.rel (%p353) target = $region40
        $region39: #{tpu_custom_call.1} parent=31 // pred_region
          %p356 = scmp.lt.s32.totalorder %s29, 1
          %s357 = scalar_select %p356, %s29, 1
          %s358 = smul.addr %s357, 4
          %s359 = smul.addr %s358, 8
          %s360 = scalar_lea.vmem %s3, %s359
        $region40: #{tpu_custom_call.1} parent=31 // pred_fallthru
          _
        // Predicated region
        $region41: #{tpu_custom_call.1} parent=31 // pred_check
          %p361 = pneg %p147
        $region42: #{tpu_custom_call.1} parent=31 // pred_check_branch
          %363 = sbr.rel (%p361) target = $region44
        $region43: #{tpu_custom_call.1} parent=31 // pred_region
          %p364 = scmp.lt.s32.totalorder %s29, 1
          %s365 = scalar_select %p364, %s29, 1
          %s366 = smul.addr %s365, 4
          %s367 = smul.addr %s366, 8
          %s368 = scalar_lea.vmem %s4, %s367
        $region44: #{tpu_custom_call.1} parent=31 // pred_fallthru
          _
        // Predicated region
        $region45: #{tpu_custom_call.1} parent=31 // pred_check
          %p369 = pneg %p173
        $region46: #{tpu_custom_call.1} parent=31 // pred_check_branch
          %371 = sbr.rel (%p369) target = $region48
        $region47: #{tpu_custom_call.1} parent=31 // pred_region
          %p372 = scmp.lt.s32.totalorder %s29, 1
          %s373 = scalar_select %p372, %s29, 1
          %s374 = smul.addr %s373, 4
          %s375 = smul.addr %s374, 8
          %s376 = scalar_lea.vmem %s5, %s375
        $region48: #{tpu_custom_call.1} parent=31 // pred_fallthru
          _
        // Predicated region
        $region49: #{tpu_custom_call.1} parent=31 // pred_check
          %p377 = pneg %p199
        $region50: #{tpu_custom_call.1} parent=31 // pred_check_branch
          %379 = sbr.rel (%p377) target = $region52
        $region51: #{tpu_custom_call.1} parent=31 // pred_region
          %p380 = scmp.lt.s32.totalorder %s29, 1
          %s381 = scalar_select %p380, %s29, 1
          %s382 = smul.addr %s381, 8
          %s383 = smul.addr %s382, 8
          %s384 = scalar_lea.vmem %s6, %s383
        $region52: #{tpu_custom_call.1} parent=31 // pred_fallthru
          _
        // Predicated region
        $region53: #{tpu_custom_call.1} parent=31 // pred_check
          %p385 = pneg %p225
        $region54: #{tpu_custom_call.1} parent=31 // pred_check_branch
          %387 = sbr.rel (%p385) target = $region56
        $region55: #{tpu_custom_call.1} parent=31 // pred_region
          %s388 = sand.u32 %s21, 1
          %s389 = scalar_lea.sflag [#allocation4], %s388
          %s390 = sand.u32 %s215, 1
          %s391 = smul.addr %s390, 8
          %s392 = scalar_lea.vmem [#allocation8], %s391
          %s394 = ssub.s32 128, 128
          %395 = vsyncadd %s389, %s394
          %s396 = smul.addr %s29, 128
          %s397 = scalar_lea.hbm %s7, %s396
          %s399 = sshll.u32 %s392, 4
          %s400 = int_to_ptr.vmem [resolvable:$true] %s399
          %402 = dma.hbm_to_vmem [thread:$0]  %s397, 128, %s400, %s389
        $region56: #{tpu_custom_call.1} parent=31 // pred_fallthru
          _
      $region32: #{tpu_custom_call.1} parent=5 // pred_fallthru
        _
      %p403 = scmp.le.s32.totalorder 1, %s21
      %p404 = scmp.lt.s32.totalorder %s21, 5
      %p405 = pnand %p403, %p404
      %p406 = pneg %p405
      // Predicated region
      $region57: #{tpu_custom_call.1} parent=5 // pred_check
        _
      $region58: #{tpu_custom_call.1} parent=5 // pred_check_branch
        %408 = sbr.rel (%p405) target = $region60
      $region59: #{tpu_custom_call.1} parent=5 // pred_region
        %s409 = ssub.s32 %s21, 1
        // Predicated region
        $region61: #{tpu_custom_call.1} parent=59 // pred_check
          %p410 = pneg %p80
        $region62: #{tpu_custom_call.1} parent=59 // pred_check_branch
          %412 = sbr.rel (%p410) target = $region64
        $region63: #{tpu_custom_call.1} parent=59 // pred_region
          %413 = dma.done [#allocation4], 128
        $region64: #{tpu_custom_call.1} parent=59 // pred_fallthru
          _
        // Predicated region
        $region65: #{tpu_custom_call.1} parent=59 // pred_check
          %p414 = pneg %p101
        $region66: #{tpu_custom_call.1} parent=59 // pred_check_branch
          %416 = sbr.rel (%p414) target = $region68
        $region67: #{tpu_custom_call.1} parent=59 // pred_region
          %417 = dma.done [#allocation7], 64
        $region68: #{tpu_custom_call.1} parent=59 // pred_fallthru
          _
        %s418 = sand.u32 %s26, 1
        %s419 = scalar_lea.sflag [#allocation4], %s418
        %s420 = sand.u32 %s218, 1
        %s421 = smul.addr %s420, 8
        %s422 = scalar_lea.vmem [#allocation8], %s421
        // Predicated region
        $region69: #{tpu_custom_call.1} parent=59 // pred_check
          %p423 = pneg %p231
        $region70: #{tpu_custom_call.1} parent=59 // pred_check_branch
          %425 = sbr.rel (%p423) target = $region72
        $region71: #{tpu_custom_call.1} parent=59 // pred_region
          %426 = dma.done %s419, 128
        $region72: #{tpu_custom_call.1} parent=59 // pred_fallthru
          _
        %p427 = scmp.lt.s32.totalorder %s30, 1
        %s428 = scalar_select %p427, %s30, 1
        %s429 = smul.addr %s428, 8
        %s430 = scalar_lea.vmem %s0, %s429
        %p431 = pneg %p59
        %p432 = pneg %p56
        %p433 = pneg %p80
        %p434 = pneg %p77
        %p435 = pneg %p101
        %p436 = pneg %p98
        %p437 = scmp.lt.s32.totalorder %s31, 1
        %s438 = scalar_select %p437, %s31, 1
        %s439 = smul.addr %s438, 4
        %s440 = smul.addr %s439, 8
        %s441 = scalar_lea.vmem %s3, %s440
        %p442 = pneg %p127
        %p443 = pneg %p124
        %p444 = scmp.lt.s32.totalorder %s31, 1
        %s445 = scalar_select %p444, %s31, 1
        %s446 = smul.addr %s445, 4
        %s447 = smul.addr %s446, 8
        %s448 = scalar_lea.vmem %s4, %s447
        %p449 = pneg %p153
        %p450 = pneg %p150
        %p451 = scmp.lt.s32.totalorder %s31, 1
        %s452 = scalar_select %p451, %s31, 1
        %s453 = smul.addr %s452, 4
        %s454 = smul.addr %s453, 8
        %s455 = scalar_lea.vmem %s5, %s454
        %p456 = pneg %p179
        %p457 = pneg %p176
        %p458 = scmp.lt.s32.totalorder %s31, 1
        %s459 = scalar_select %p458, %s31, 1
        %s460 = smul.addr %s459, 8
        %s461 = smul.addr %s460, 8
        %s462 = scalar_lea.vmem %s6, %s461
        %p463 = pneg %p205
        %p464 = pneg %p202
        %s465 = sand.u32 %s26, 1
        %s466 = scalar_lea.sflag [#allocation4], %s465
        %s467 = sand.u32 %s218, 1
        %s468 = smul.addr %s467, 8
        %s469 = scalar_lea.vmem [#allocation8], %s468
        %p470 = pneg %p231
        %p471 = pneg %p228
        %p472 = pneg %p252
        %p473 = pneg %p249
        %p474 = pneg %p273
        %p475 = pneg %p270
        %p476 = pneg %p299
        %p477 = pneg %p296
        %s478 = sand.u32 %s286, 1
        %s479 = scalar_lea.sflag [#allocation5], %s478
        %s480 = sand.u32 %s286, 1
        %s481 = smul.addr %s480, 8
        %s482 = scalar_lea.vmem [#allocation9], %s481
        %p483 = scmp.lt.s32.totalorder %s30, 1
        %s484 = scalar_select %p483, %s30, 1
        %s485 = smul.addr %s484, 8
        %s486 = scalar_lea.vmem %s0, %s485
        %p487 = scmp.lt.s32.totalorder %s31, 1
        %s488 = scalar_select %p487, %s31, 1
        %s489 = smul.addr %s488, 4
        %s490 = smul.addr %s489, 8
        %s491 = scalar_lea.vmem %s3, %s490
        %p492 = scmp.lt.s32.totalorder %s31, 1
        %s493 = scalar_select %p492, %s31, 1
        %s494 = smul.addr %s493, 4
        %s495 = smul.addr %s494, 8
        %s496 = scalar_lea.vmem %s4, %s495
        %p497 = scmp.lt.s32.totalorder %s31, 1
        %s498 = scalar_select %p497, %s31, 1
        %s499 = smul.addr %s498, 4
        %s500 = smul.addr %s499, 8
        %s501 = scalar_lea.vmem %s5, %s500
        %p502 = scmp.lt.s32.totalorder %s31, 1
        %s503 = scalar_select %p502, %s31, 1
        %s504 = smul.addr %s503, 8
        %s505 = smul.addr %s504, 8
        %s506 = scalar_lea.vmem %s6, %s505
        %p507 = scmp.eq.s32.totalorder %s31, 0
        // Predicated region
        $region73: #{tpu_custom_call.1} parent=59 // pred_check
          %p508 = pneg %p507
        $region74: #{tpu_custom_call.1} parent=59 // pred_check_branch
          %510 = sbr.rel (%p508) target = $region76
        $region75: #{tpu_custom_call.1} parent=59 // pred_region
          %v511 = vld [vmem:[%s486] sm:$0xff]
          %v512 = vld [vmem:[#allocation6] sm:$0xf]
          %vm513 = vcmask 31744
          %v515 = vsel %vm513, %v511, 0
          %vm517 = vcmask 1043456
          %v519 = vsel %vm517, %v512, 0
          %521 = vmatprep.subr.mxu0 0.0
          %522 = vmatpush1.msra.mxu0 0.0
          %523 = vmatprep.subr.mxu0 0.0
          %524 = vmatpush1.msra.mxu0 0.0
          %525 = vmatprep.subr.mxu0 0.0
          %526 = vmatpush1.msra.mxu0 0.0
          %527 = vmatprep.subr.mxu0 0.0
          %528 = vmatpush1.msra.mxu0 0.0
          %529 = vmatprep.subr.mxu0 0.0
          %530 = vmatpush1.msra.mxu0 0.0
          %531 = vmatprep.subr.mxu0 0.0
          %532 = vmatpush1.msra.mxu0 0.0
          %533 = vmatprep.subr.mxu0 0.0
          %534 = vmatpush1.msra.mxu0 0.0
          %535 = vmatprep.subr.mxu0 0.0
          %536 = vmatpush1.msra.mxu0 0.0
          %537 = vmatprep.subr.mxu0 0.0
          %538 = vmatpush1.msra.mxu0 0.0
          %539 = vmatprep.subr.mxu0 0.0
          %540 = vmatpush1.msra.mxu0 0.0
          %541 = vmatprep.subr.mxu0 0.0
          %542 = vmatpush1.msra.mxu0 0.0
          %543 = vmatprep.subr.mxu0 0.0
          %544 = vmatpush1.msra.mxu0 0.0
          %545 = vmatprep.subr.mxu0 0.0
          %546 = vmatpush1.msra.mxu0 0.0
          %547 = vmatprep.subr.mxu0 0.0
          %548 = vmatpush1.msra.mxu0 0.0
          %549 = vmatprep.subr.mxu0 0.0
          %550 = vmatpush1.msra.mxu0 0.0
          %551 = vmatprep.subr.mxu0 0.0
          %552 = vmatpush1.msra.mxu0 %v519
          %553 = vmatprep.subr.mxu0 0.0
          %554 = vmatpush2.msra.mxu0 0.0
          %555 = vmatprep.subr.mxu0 0.0
          %556 = vmatpush2.msra.mxu0 0.0
          %557 = vmatprep.subr.mxu0 0.0
          %558 = vmatpush2.msra.mxu0 0.0
          %559 = vmatprep.subr.mxu0 0.0
          %560 = vmatpush2.msra.mxu0 0.0
          %561 = vmatprep.subr.mxu0 0.0
          %562 = vmatpush2.msra.mxu0 0.0
          %563 = vmatprep.subr.mxu0 0.0
          %564 = vmatpush2.msra.mxu0 0.0
          %565 = vmatprep.subr.mxu0 0.0
          %566 = vmatpush2.msra.mxu0 0.0
          %567 = vmatprep.subr.mxu0 0.0
          %568 = vmatpush2.msra.mxu0 0.0
          %569 = vmatprep.subr.mxu0 0.0
          %570 = vmatpush2.msra.mxu0 0.0
          %571 = vmatprep.subr.mxu0 0.0
          %572 = vmatpush2.msra.mxu0 0.0
          %573 = vmatprep.subr.mxu0 0.0
          %574 = vmatpush2.msra.mxu0 0.0
          %575 = vmatprep.subr.mxu0 0.0
          %576 = vmatpush2.msra.mxu0 0.0
          %577 = vmatprep.subr.mxu0 0.0
          %578 = vmatpush2.msra.mxu0 0.0
          %579 = vmatprep.subr.mxu0 0.0
          %580 = vmatpush2.msra.mxu0 0.0
          %581 = vmatprep.subr.mxu0 0.0
          %582 = vmatpush2.msra.mxu0 0.0
          %583 = vmatprep.subr.mxu0 0.0
          %584 = vmatpush2.msra.mxu0 0.0
          %585 = vmatprep.mubr.f32.mxu0 0.0
          %586 = vmatmul.mubr.f32.gmra.mxu0 %v515
          %v587 = vpop.f32.mrf.mxu0
          %v588 = vadd.f32 0.0, %v587
          %v589 = vpop.f32.mrf.mxu0
          %590 = vdwg.mxu0
          %v591 = vld [vmem:[#allocation3] sm:$0xff]
          %v592 = vadd.f32 %v588, %v591
          %vm593 = vcmask 261120
          %594 = vst.msk [vmem:[#allocation2] sm:$0xff] %vm593, %v592
        $region76: #{tpu_custom_call.1} parent=59 // pred_fallthru
          _
        %v595 = vld [vmem:[#allocation2] sm:$0xff]
        %v596 = vld [vmem:[%s422] sm:$0xff]
        %v597 = vld [vmem:[%s491] sm:$0xff]
        %v598 = vld [vmem:[%s491 + $0x8] sm:$0xff]
        %v599 = vld [vmem:[%s491 + $0x10] sm:$0xff]
        %v600 = vld [vmem:[%s491 + $0x18] sm:$0xff]
        %v601 = vlaneseq
        %v602 = vshrl.u32 %v601, 7
        %v603 = vsub.s32 0, %v602
        %v604 = vrot.slane %v596, %v603
        %vm605 = vcmask 261120
        %v607 = vsel %vm605, %v595, 0
        %609 = vmatprep.subr.mxu0 0.0
        %610 = vmatpush1.msra.mxu0 0.0
        %611 = vmatprep.subr.mxu0 0.0
        %612 = vmatpush1.msra.mxu0 0.0
        %613 = vmatprep.subr.mxu0 0.0
        %614 = vmatpush1.msra.mxu0 0.0
        %615 = vmatprep.subr.mxu0 0.0
        %616 = vmatpush1.msra.mxu0 0.0
        %617 = vmatprep.subr.mxu0 0.0
        %618 = vmatpush1.msra.mxu0 0.0
        %619 = vmatprep.subr.mxu0 0.0
        %620 = vmatpush1.msra.mxu0 0.0
        %621 = vmatprep.subr.mxu0 0.0
        %622 = vmatpush1.msra.mxu0 0.0
        %623 = vmatprep.subr.mxu0 0.0
        %624 = vmatpush1.msra.mxu0 0.0
        %625 = vmatprep.subr.mxu0 0.0
        %626 = vmatpush1.msra.mxu0 0.0
        %627 = vmatprep.subr.mxu0 0.0
        %628 = vmatpush1.msra.mxu0 0.0
        %629 = vmatprep.subr.mxu0 0.0
        %630 = vmatpush1.msra.mxu0 0.0
        %631 = vmatprep.subr.mxu0 0.0
        %632 = vmatpush1.msra.mxu0 0.0
        %633 = vmatprep.subr.mxu0 0.0
        %634 = vmatpush1.msra.mxu0 %v600
        %635 = vmatprep.subr.mxu0 0.0
        %636 = vmatpush1.msra.mxu0 %v599
        %637 = vmatprep.subr.mxu0 0.0
        %638 = vmatpush1.msra.mxu0 %v598
        %639 = vmatprep.subr.mxu0 0.0
        %640 = vmatpush1.msra.mxu0 %v597
        %641 = vmatprep.subr.mxu0 0.0
        %642 = vmatpush2.msra.mxu0 0.0
        %643 = vmatprep.subr.mxu0 0.0
        %644 = vmatpush2.msra.mxu0 0.0
        %645 = vmatprep.subr.mxu0 0.0
        %646 = vmatpush2.msra.mxu0 0.0
        %647 = vmatprep.subr.mxu0 0.0
        %648 = vmatpush2.msra.mxu0 0.0
        %649 = vmatprep.subr.mxu0 0.0
        %650 = vmatpush2.msra.mxu0 0.0
        %651 = vmatprep.subr.mxu0 0.0
        %652 = vmatpush2.msra.mxu0 0.0
        %653 = vmatprep.subr.mxu0 0.0
        %654 = vmatpush2.msra.mxu0 0.0
        %655 = vmatprep.subr.mxu0 0.0
        %656 = vmatpush2.msra.mxu0 0.0
        %657 = vmatprep.subr.mxu0 0.0
        %658 = vmatpush2.msra.mxu0 0.0
        %659 = vmatprep.subr.mxu0 0.0
        %660 = vmatpush2.msra.mxu0 0.0
        %661 = vmatprep.subr.mxu0 0.0
        %662 = vmatpush2.msra.mxu0 0.0
        %663 = vmatprep.subr.mxu0 0.0
        %664 = vmatpush2.msra.mxu0 0.0
        %665 = vmatprep.subr.mxu0 0.0
        %666 = vmatpush2.msra.mxu0 0.0
        %667 = vmatprep.subr.mxu0 0.0
        %668 = vmatpush2.msra.mxu0 0.0
        %669 = vmatprep.subr.mxu0 0.0
        %670 = vmatpush2.msra.mxu0 0.0
        %671 = vmatprep.subr.mxu0 0.0
        %672 = vmatpush2.msra.mxu0 0.0
        %673 = vmatprep.mubr.f32.mxu0 0.0
        %674 = vmatmul.mubr.f32.gmra.mxu0 %v607
        %v675 = vpop.f32.mrf.mxu0
        %v676 = vadd.f32 %v604, %v675
        %v677 = vpop.f32.mrf.mxu0
        %678 = vdwg.mxu0
        %680 = vrot.lane.b32.xlu0 %v676, 120
        %v681 = vpop.permute.xlu0 %680
        %682 = vrot.lane.b32.xlu0 %v676, 112
        %v683 = vpop.permute.xlu0 %682
        %684 = vrot.lane.b32.xlu0 %v676, 104
        %v685 = vpop.permute.xlu0 %684
        %686 = vrot.lane.b32.xlu0 %v676, 96
        %v687 = vpop.permute.xlu0 %686
        %vm688 = vcmask 64512
        %v689 = vsel %vm688, %v676, 0
        %v691 = vsel %vm688, %v687, 0
        %693 = vmatprep.subr.mxu0 0.0
        %694 = vmatpush1.xpose.msra.mxu0 0.0
        %695 = vmatprep.subr.mxu0 0.0
        %696 = vmatpush1.xpose.msra.mxu0 0.0
        %697 = vmatprep.subr.mxu0 0.0
        %698 = vmatpush1.xpose.msra.mxu0 0.0
        %699 = vmatprep.subr.mxu0 0.0
        %700 = vmatpush1.xpose.msra.mxu0 0.0
        %701 = vmatprep.subr.mxu0 0.0
        %702 = vmatpush1.xpose.msra.mxu0 0.0
        %703 = vmatprep.subr.mxu0 0.0
        %704 = vmatpush1.xpose.msra.mxu0 0.0
        %705 = vmatprep.subr.mxu0 0.0
        %706 = vmatpush1.xpose.msra.mxu0 0.0
        %707 = vmatprep.subr.mxu0 0.0
        %708 = vmatpush1.xpose.msra.mxu0 0.0
        %709 = vmatprep.subr.mxu0 0.0
        %710 = vmatpush1.xpose.msra.mxu0 0.0
        %711 = vmatprep.subr.mxu0 0.0
        %712 = vmatpush1.xpose.msra.mxu0 0.0
        %713 = vmatprep.subr.mxu0 0.0
        %714 = vmatpush1.xpose.msra.mxu0 0.0
        %715 = vmatprep.subr.mxu0 0.0
        %716 = vmatpush1.xpose.msra.mxu0 0.0
        %717 = vmatprep.subr.mxu0 0.0
        %718 = vmatpush1.xpose.msra.mxu0 0.0
        %719 = vmatprep.subr.mxu0 0.0
        %720 = vmatpush1.xpose.msra.mxu0 0.0
        %721 = vmatprep.subr.mxu0 0.0
        %722 = vmatpush1.xpose.msra.mxu0 0.0
        %723 = vmatprep.subr.mxu0 0.0
        %724 = vmatpush1.xpose.msra.mxu0 %v691
        %725 = vmatprep.subr.mxu0 0.0
        %726 = vmatpush2.xpose.msra.mxu0 0.0
        %727 = vmatprep.subr.mxu0 0.0
        %728 = vmatpush2.xpose.msra.mxu0 0.0
        %729 = vmatprep.subr.mxu0 0.0
        %730 = vmatpush2.xpose.msra.mxu0 0.0
        %731 = vmatprep.subr.mxu0 0.0
        %732 = vmatpush2.xpose.msra.mxu0 0.0
        %733 = vmatprep.subr.mxu0 0.0
        %734 = vmatpush2.xpose.msra.mxu0 0.0
        %735 = vmatprep.subr.mxu0 0.0
        %736 = vmatpush2.xpose.msra.mxu0 0.0
        %737 = vmatprep.subr.mxu0 0.0
        %738 = vmatpush2.xpose.msra.mxu0 0.0
        %739 = vmatprep.subr.mxu0 0.0
        %740 = vmatpush2.xpose.msra.mxu0 0.0
        %741 = vmatprep.subr.mxu0 0.0
        %742 = vmatpush2.xpose.msra.mxu0 0.0
        %743 = vmatprep.subr.mxu0 0.0
        %744 = vmatpush2.xpose.msra.mxu0 0.0
        %745 = vmatprep.subr.mxu0 0.0
        %746 = vmatpush2.xpose.msra.mxu0 0.0
        %747 = vmatprep.subr.mxu0 0.0
        %748 = vmatpush2.xpose.msra.mxu0 0.0
        %749 = vmatprep.subr.mxu0 0.0
        %750 = vmatpush2.xpose.msra.mxu0 0.0
        %751 = vmatprep.subr.mxu0 0.0
        %752 = vmatpush2.xpose.msra.mxu0 0.0
        %753 = vmatprep.subr.mxu0 0.0
        %754 = vmatpush2.xpose.msra.mxu0 0.0
        %755 = vmatprep.subr.mxu0 0.0
        %756 = vmatpush2.xpose.msra.mxu0 0.0
        %757 = vmatprep.mubr.f32.mxu0 0.0
        %758 = vmatmul.mubr.f32.gmra.mxu0 %v689
        %v759 = vpop.f32.mrf.mxu0
        %v760 = vadd.f32 0.0, %v759
        %v761 = vpop.f32.mrf.mxu0
        %762 = vdwg.mxu0
        %763 = vrot.lane.b32.xlu0 %v681, 96
        %v764 = vpop.permute.xlu0 %763
        %v765 = vsel %vm688, %v681, 0
        %v767 = vsel %vm688, %v764, 0
        %769 = vmatprep.subr.mxu0 0.0
        %770 = vmatpush1.xpose.msra.mxu0 0.0
        %771 = vmatprep.subr.mxu0 0.0
        %772 = vmatpush1.xpose.msra.mxu0 0.0
        %773 = vmatprep.subr.mxu0 0.0
        %774 = vmatpush1.xpose.msra.mxu0 0.0
        %775 = vmatprep.subr.mxu0 0.0
        %776 = vmatpush1.xpose.msra.mxu0 0.0
        %777 = vmatprep.subr.mxu0 0.0
        %778 = vmatpush1.xpose.msra.mxu0 0.0
        %779 = vmatprep.subr.mxu0 0.0
        %780 = vmatpush1.xpose.msra.mxu0 0.0
        %781 = vmatprep.subr.mxu0 0.0
        %782 = vmatpush1.xpose.msra.mxu0 0.0
        %783 = vmatprep.subr.mxu0 0.0
        %784 = vmatpush1.xpose.msra.mxu0 0.0
        %785 = vmatprep.subr.mxu0 0.0
        %786 = vmatpush1.xpose.msra.mxu0 0.0
        %787 = vmatprep.subr.mxu0 0.0
        %788 = vmatpush1.xpose.msra.mxu0 0.0
        %789 = vmatprep.subr.mxu0 0.0
        %790 = vmatpush1.xpose.msra.mxu0 0.0
        %791 = vmatprep.subr.mxu0 0.0
        %792 = vmatpush1.xpose.msra.mxu0 0.0
        %793 = vmatprep.subr.mxu0 0.0
        %794 = vmatpush1.xpose.msra.mxu0 0.0
        %795 = vmatprep.subr.mxu0 0.0
        %796 = vmatpush1.xpose.msra.mxu0 0.0
        %797 = vmatprep.subr.mxu0 0.0
        %798 = vmatpush1.xpose.msra.mxu0 0.0
        %799 = vmatprep.subr.mxu0 0.0
        %800 = vmatpush1.xpose.msra.mxu0 %v767
        %801 = vmatprep.subr.mxu0 0.0
        %802 = vmatpush2.xpose.msra.mxu0 0.0
        %803 = vmatprep.subr.mxu0 0.0
        %804 = vmatpush2.xpose.msra.mxu0 0.0
        %805 = vmatprep.subr.mxu0 0.0
        %806 = vmatpush2.xpose.msra.mxu0 0.0
        %807 = vmatprep.subr.mxu0 0.0
        %808 = vmatpush2.xpose.msra.mxu0 0.0
        %809 = vmatprep.subr.mxu0 0.0
        %810 = vmatpush2.xpose.msra.mxu0 0.0
        %811 = vmatprep.subr.mxu0 0.0
        %812 = vmatpush2.xpose.msra.mxu0 0.0
        %813 = vmatprep.subr.mxu0 0.0
        %814 = vmatpush2.xpose.msra.mxu0 0.0
        %815 = vmatprep.subr.mxu0 0.0
        %816 = vmatpush2.xpose.msra.mxu0 0.0
        %817 = vmatprep.subr.mxu0 0.0
        %818 = vmatpush2.xpose.msra.mxu0 0.0
        %819 = vmatprep.subr.mxu0 0.0
        %820 = vmatpush2.xpose.msra.mxu0 0.0
        %821 = vmatprep.subr.mxu0 0.0
        %822 = vmatpush2.xpose.msra.mxu0 0.0
        %823 = vmatprep.subr.mxu0 0.0
        %824 = vmatpush2.xpose.msra.mxu0 0.0
        %825 = vmatprep.subr.mxu0 0.0
        %826 = vmatpush2.xpose.msra.mxu0 0.0
        %827 = vmatprep.subr.mxu0 0.0
        %828 = vmatpush2.xpose.msra.mxu0 0.0
        %829 = vmatprep.subr.mxu0 0.0
        %830 = vmatpush2.xpose.msra.mxu0 0.0
        %831 = vmatprep.subr.mxu0 0.0
        %832 = vmatpush2.xpose.msra.mxu0 0.0
        %833 = vmatprep.mubr.f32.mxu0 0.0
        %834 = vmatmul.mubr.f32.gmra.mxu0 %v765
        %v835 = vpop.f32.mrf.mxu0
        %v836 = vadd.f32 0.0, %v835
        %v837 = vpop.f32.mrf.mxu0
        %838 = vdwg.mxu0
        %839 = vrot.lane.b32.xlu0 %v683, 96
        %v840 = vpop.permute.xlu0 %839
        %v841 = vsel %vm688, %v683, 0
        %v843 = vsel %vm688, %v840, 0
        %845 = vmatprep.subr.mxu0 0.0
        %846 = vmatpush1.xpose.msra.mxu0 0.0
        %847 = vmatprep.subr.mxu0 0.0
        %848 = vmatpush1.xpose.msra.mxu0 0.0
        %849 = vmatprep.subr.mxu0 0.0
        %850 = vmatpush1.xpose.msra.mxu0 0.0
        %851 = vmatprep.subr.mxu0 0.0
        %852 = vmatpush1.xpose.msra.mxu0 0.0
        %853 = vmatprep.subr.mxu0 0.0
        %854 = vmatpush1.xpose.msra.mxu0 0.0
        %855 = vmatprep.subr.mxu0 0.0
        %856 = vmatpush1.xpose.msra.mxu0 0.0
        %857 = vmatprep.subr.mxu0 0.0
        %858 = vmatpush1.xpose.msra.mxu0 0.0
        %859 = vmatprep.subr.mxu0 0.0
        %860 = vmatpush1.xpose.msra.mxu0 0.0
        %861 = vmatprep.subr.mxu0 0.0
        %862 = vmatpush1.xpose.msra.mxu0 0.0
        %863 = vmatprep.subr.mxu0 0.0
        %864 = vmatpush1.xpose.msra.mxu0 0.0
        %865 = vmatprep.subr.mxu0 0.0
        %866 = vmatpush1.xpose.msra.mxu0 0.0
        %867 = vmatprep.subr.mxu0 0.0
        %868 = vmatpush1.xpose.msra.mxu0 0.0
        %869 = vmatprep.subr.mxu0 0.0
        %870 = vmatpush1.xpose.msra.mxu0 0.0
        %871 = vmatprep.subr.mxu0 0.0
        %872 = vmatpush1.xpose.msra.mxu0 0.0
        %873 = vmatprep.subr.mxu0 0.0
        %874 = vmatpush1.xpose.msra.mxu0 0.0
        %875 = vmatprep.subr.mxu0 0.0
        %876 = vmatpush1.xpose.msra.mxu0 %v843
        %877 = vmatprep.subr.mxu0 0.0
        %878 = vmatpush2.xpose.msra.mxu0 0.0
        %879 = vmatprep.subr.mxu0 0.0
        %880 = vmatpush2.xpose.msra.mxu0 0.0
        %881 = vmatprep.subr.mxu0 0.0
        %882 = vmatpush2.xpose.msra.mxu0 0.0
        %883 = vmatprep.subr.mxu0 0.0
        %884 = vmatpush2.xpose.msra.mxu0 0.0
        %885 = vmatprep.subr.mxu0 0.0
        %886 = vmatpush2.xpose.msra.mxu0 0.0
        %887 = vmatprep.subr.mxu0 0.0
        %888 = vmatpush2.xpose.msra.mxu0 0.0
        %889 = vmatprep.subr.mxu0 0.0
        %890 = vmatpush2.xpose.msra.mxu0 0.0
        %891 = vmatprep.subr.mxu0 0.0
        %892 = vmatpush2.xpose.msra.mxu0 0.0
        %893 = vmatprep.subr.mxu0 0.0
        %894 = vmatpush2.xpose.msra.mxu0 0.0
        %895 = vmatprep.subr.mxu0 0.0
        %896 = vmatpush2.xpose.msra.mxu0 0.0
        %897 = vmatprep.subr.mxu0 0.0
        %898 = vmatpush2.xpose.msra.mxu0 0.0
        %899 = vmatprep.subr.mxu0 0.0
        %900 = vmatpush2.xpose.msra.mxu0 0.0
        %901 = vmatprep.subr.mxu0 0.0
        %902 = vmatpush2.xpose.msra.mxu0 0.0
        %903 = vmatprep.subr.mxu0 0.0
        %904 = vmatpush2.xpose.msra.mxu0 0.0
        %905 = vmatprep.subr.mxu0 0.0
        %906 = vmatpush2.xpose.msra.mxu0 0.0
        %907 = vmatprep.subr.mxu0 0.0
        %908 = vmatpush2.xpose.msra.mxu0 0.0
        %909 = vmatprep.mubr.f32.mxu0 0.0
        %910 = vmatmul.mubr.f32.gmra.mxu0 %v841
        %v911 = vpop.f32.mrf.mxu0
        %v912 = vadd.f32 0.0, %v911
        %v913 = vpop.f32.mrf.mxu0
        %914 = vdwg.mxu0
        %915 = vrot.lane.b32.xlu0 %v685, 96
        %v916 = vpop.permute.xlu0 %915
        %v917 = vsel %vm688, %v685, 0
        %v919 = vsel %vm688, %v916, 0
        %921 = vmatprep.subr.mxu0 0.0
        %922 = vmatpush1.xpose.msra.mxu0 0.0
        %923 = vmatprep.subr.mxu0 0.0
        %924 = vmatpush1.xpose.msra.mxu0 0.0
        %925 = vmatprep.subr.mxu0 0.0
        %926 = vmatpush1.xpose.msra.mxu0 0.0
        %927 = vmatprep.subr.mxu0 0.0
        %928 = vmatpush1.xpose.msra.mxu0 0.0
        %929 = vmatprep.subr.mxu0 0.0
        %930 = vmatpush1.xpose.msra.mxu0 0.0
        %931 = vmatprep.subr.mxu0 0.0
        %932 = vmatpush1.xpose.msra.mxu0 0.0
        %933 = vmatprep.subr.mxu0 0.0
        %934 = vmatpush1.xpose.msra.mxu0 0.0
        %935 = vmatprep.subr.mxu0 0.0
        %936 = vmatpush1.xpose.msra.mxu0 0.0
        %937 = vmatprep.subr.mxu0 0.0
        %938 = vmatpush1.xpose.msra.mxu0 0.0
        %939 = vmatprep.subr.mxu0 0.0
        %940 = vmatpush1.xpose.msra.mxu0 0.0
        %941 = vmatprep.subr.mxu0 0.0
        %942 = vmatpush1.xpose.msra.mxu0 0.0
        %943 = vmatprep.subr.mxu0 0.0
        %944 = vmatpush1.xpose.msra.mxu0 0.0
        %945 = vmatprep.subr.mxu0 0.0
        %946 = vmatpush1.xpose.msra.mxu0 0.0
        %947 = vmatprep.subr.mxu0 0.0
        %948 = vmatpush1.xpose.msra.mxu0 0.0
        %949 = vmatprep.subr.mxu0 0.0
        %950 = vmatpush1.xpose.msra.mxu0 0.0
        %951 = vmatprep.subr.mxu0 0.0
        %952 = vmatpush1.xpose.msra.mxu0 %v919
        %953 = vmatprep.subr.mxu0 0.0
        %954 = vmatpush2.xpose.msra.mxu0 0.0
        %955 = vmatprep.subr.mxu0 0.0
        %956 = vmatpush2.xpose.msra.mxu0 0.0
        %957 = vmatprep.subr.mxu0 0.0
        %958 = vmatpush2.xpose.msra.mxu0 0.0
        %959 = vmatprep.subr.mxu0 0.0
        %960 = vmatpush2.xpose.msra.mxu0 0.0
        %961 = vmatprep.subr.mxu0 0.0
        %962 = vmatpush2.xpose.msra.mxu0 0.0
        %963 = vmatprep.subr.mxu0 0.0
        %964 = vmatpush2.xpose.msra.mxu0 0.0
        %965 = vmatprep.subr.mxu0 0.0
        %966 = vmatpush2.xpose.msra.mxu0 0.0
        %967 = vmatprep.subr.mxu0 0.0
        %968 = vmatpush2.xpose.msra.mxu0 0.0
        %969 = vmatprep.subr.mxu0 0.0
        %970 = vmatpush2.xpose.msra.mxu0 0.0
        %971 = vmatprep.subr.mxu0 0.0
        %972 = vmatpush2.xpose.msra.mxu0 0.0
        %973 = vmatprep.subr.mxu0 0.0
        %974 = vmatpush2.xpose.msra.mxu0 0.0
        %975 = vmatprep.subr.mxu0 0.0
        %976 = vmatpush2.xpose.msra.mxu0 0.0
        %977 = vmatprep.subr.mxu0 0.0
        %978 = vmatpush2.xpose.msra.mxu0 0.0
        %979 = vmatprep.subr.mxu0 0.0
        %980 = vmatpush2.xpose.msra.mxu0 0.0
        %981 = vmatprep.subr.mxu0 0.0
        %982 = vmatpush2.xpose.msra.mxu0 0.0
        %983 = vmatprep.subr.mxu0 0.0
        %984 = vmatpush2.xpose.msra.mxu0 0.0
        %985 = vmatprep.mubr.f32.mxu0 0.0
        %986 = vmatmul.mubr.f32.gmra.mxu0 %v917
        %v987 = vpop.f32.mrf.mxu0
        %v988 = vadd.f32 0.0, %v987
        %v989 = vpop.f32.mrf.mxu0
        %990 = vdwg.mxu0
        %v991 = vsel %vm688, %v760, -inf
        %992 = vmax.xlane.f32.xlu0 %v991
        %v993 = vpop.xlane.xlu0 %992
        %v994 = vsel %vm688, %v836, -inf
        %995 = vmax.xlane.f32.xlu0 %v994
        %v996 = vpop.xlane.xlu0 %995
        %v997 = vsel %vm688, %v912, -inf
        %998 = vmax.xlane.f32.xlu0 %v997
        %v999 = vpop.xlane.xlu0 %998
        %v1000 = vsel %vm688, %v988, -inf
        %1001 = vmax.xlane.f32.xlu0 %v1000
        %v1002 = vpop.xlane.xlu0 %1001
        %v1003 = vsub.f32 %v760, %v993
        %v1004 = vsub.f32 %v836, %v996
        %v1005 = vsub.f32 %v912, %v999
        %v1006 = vsub.f32 %v988, %v1002
        %v1007 = vmul.f32 %v1003, 1.442695
        %v1008 = vpow.pop %v1007
        %v1009 = vmul.f32 %v1004, 1.442695
        %v1010 = vpow.pop %v1009
        %v1011 = vmul.f32 %v1005, 1.442695
        %v1012 = vpow.pop %v1011
        %v1013 = vmul.f32 %v1006, 1.442695
        %v1014 = vpow.pop %v1013
        %v1015 = vsel %vm688, %v1008, 0.0
        %1016 = vadd.xlane.f32.xlu0 %v1015
        %v1017 = vpop.xlane.xlu0 %1016
        %v1018 = vsel %vm688, %v1010, 0.0
        %1019 = vadd.xlane.f32.xlu0 %v1018
        %v1020 = vpop.xlane.xlu0 %1019
        %v1021 = vsel %vm688, %v1012, 0.0
        %1022 = vadd.xlane.f32.xlu0 %v1021
        %v1023 = vpop.xlane.xlu0 %1022
        %v1024 = vsel %vm688, %v1014, 0.0
        %1025 = vadd.xlane.f32.xlu0 %v1024
        %v1026 = vpop.xlane.xlu0 %1025
        %1027 = vrot.lane.b32.xlu0 %v676, 64
        %v1028 = vpop.permute.xlu0 %1027
        %v1031 = vsel %vm688, %v1008, 0
        %1033 = vmatprep.subr.mxu0 0.0
        %1034 = vmatpush1.msra.mxu0 0.0
        %1035 = vmatprep.subr.mxu0 0.0
        %1036 = vmatpush1.msra.mxu0 0.0
        %1037 = vmatprep.subr.mxu0 0.0
        %1038 = vmatpush1.msra.mxu0 0.0
        %1039 = vmatprep.subr.mxu0 0.0
        %1040 = vmatpush1.msra.mxu0 0.0
        %1041 = vmatprep.subr.mxu0 0.0
        %1042 = vmatpush1.msra.mxu0 0.0
        %1043 = vmatprep.subr.mxu0 0.0
        %1044 = vmatpush1.msra.mxu0 0.0
        %1045 = vmatprep.subr.mxu0 0.0
        %1046 = vmatpush1.msra.mxu0 0.0
        %1047 = vmatprep.subr.mxu0 0.0
        %1048 = vmatpush1.msra.mxu0 0.0
        %1049 = vmatprep.subr.mxu0 0.0
        %1050 = vmatpush1.msra.mxu0 0.0
        %1051 = vmatprep.subr.mxu0 0.0
        %1052 = vmatpush1.msra.mxu0 0.0
        %1053 = vmatprep.subr.mxu0 0.0
        %1054 = vmatpush1.msra.mxu0 0.0
        %1055 = vmatprep.subr.mxu0 0.0
        %1056 = vmatpush1.msra.mxu0 0.0
        %1057 = vmatprep.subr.mxu0 0.0
        %1058 = vmatpush1.msra.mxu0 0.0
        %1059 = vmatprep.subr.mxu0 0.0
        %1060 = vmatpush1.msra.mxu0 0.0
        %1061 = vmatprep.subr.mxu0 0.0
        %1062 = vmatpush1.msra.mxu0 0.0
        %1063 = vmatprep.subr.mxu0 0.0
        %1064 = vmatpush1.msra.mxu0 %v1028
        %1065 = vmatprep.subr.mxu0 0.0
        %1066 = vmatpush2.msra.mxu0 0.0
        %1067 = vmatprep.subr.mxu0 0.0
        %1068 = vmatpush2.msra.mxu0 0.0
        %1069 = vmatprep.subr.mxu0 0.0
        %1070 = vmatpush2.msra.mxu0 0.0
        %1071 = vmatprep.subr.mxu0 0.0
        %1072 = vmatpush2.msra.mxu0 0.0
        %1073 = vmatprep.subr.mxu0 0.0
        %1074 = vmatpush2.msra.mxu0 0.0
        %1075 = vmatprep.subr.mxu0 0.0
        %1076 = vmatpush2.msra.mxu0 0.0
        %1077 = vmatprep.subr.mxu0 0.0
        %1078 = vmatpush2.msra.mxu0 0.0
        %1079 = vmatprep.subr.mxu0 0.0
        %1080 = vmatpush2.msra.mxu0 0.0
        %1081 = vmatprep.subr.mxu0 0.0
        %1082 = vmatpush2.msra.mxu0 0.0
        %1083 = vmatprep.subr.mxu0 0.0
        %1084 = vmatpush2.msra.mxu0 0.0
        %1085 = vmatprep.subr.mxu0 0.0
        %1086 = vmatpush2.msra.mxu0 0.0
        %1087 = vmatprep.subr.mxu0 0.0
        %1088 = vmatpush2.msra.mxu0 0.0
        %1089 = vmatprep.subr.mxu0 0.0
        %1090 = vmatpush2.msra.mxu0 0.0
        %1091 = vmatprep.subr.mxu0 0.0
        %1092 = vmatpush2.msra.mxu0 0.0
        %1093 = vmatprep.subr.mxu0 0.0
        %1094 = vmatpush2.msra.mxu0 0.0
        %1095 = vmatprep.subr.mxu0 0.0
        %1096 = vmatpush2.msra.mxu0 0.0
        %1097 = vmatprep.mubr.f32.mxu0 0.0
        %1098 = vmatmul.mubr.f32.gmra.mxu0 %v1031
        %v1099 = vpop.f32.mrf.mxu0
        %v1100 = vadd.f32 0.0, %v1099
        %v1101 = vpop.f32.mrf.mxu0
        %1102 = vdwg.mxu0
        %1103 = vrot.lane.b32.xlu0 %v681, 64
        %v1104 = vpop.permute.xlu0 %1103
        %v1107 = vsel %vm688, %v1010, 0
        %1109 = vmatprep.subr.mxu0 0.0
        %1110 = vmatpush1.msra.mxu0 0.0
        %1111 = vmatprep.subr.mxu0 0.0
        %1112 = vmatpush1.msra.mxu0 0.0
        %1113 = vmatprep.subr.mxu0 0.0
        %1114 = vmatpush1.msra.mxu0 0.0
        %1115 = vmatprep.subr.mxu0 0.0
        %1116 = vmatpush1.msra.mxu0 0.0
        %1117 = vmatprep.subr.mxu0 0.0
        %1118 = vmatpush1.msra.mxu0 0.0
        %1119 = vmatprep.subr.mxu0 0.0
        %1120 = vmatpush1.msra.mxu0 0.0
        %1121 = vmatprep.subr.mxu0 0.0
        %1122 = vmatpush1.msra.mxu0 0.0
        %1123 = vmatprep.subr.mxu0 0.0
        %1124 = vmatpush1.msra.mxu0 0.0
        %1125 = vmatprep.subr.mxu0 0.0
        %1126 = vmatpush1.msra.mxu0 0.0
        %1127 = vmatprep.subr.mxu0 0.0
        %1128 = vmatpush1.msra.mxu0 0.0
        %1129 = vmatprep.subr.mxu0 0.0
        %1130 = vmatpush1.msra.mxu0 0.0
        %1131 = vmatprep.subr.mxu0 0.0
        %1132 = vmatpush1.msra.mxu0 0.0
        %1133 = vmatprep.subr.mxu0 0.0
        %1134 = vmatpush1.msra.mxu0 0.0
        %1135 = vmatprep.subr.mxu0 0.0
        %1136 = vmatpush1.msra.mxu0 0.0
        %1137 = vmatprep.subr.mxu0 0.0
        %1138 = vmatpush1.msra.mxu0 0.0
        %1139 = vmatprep.subr.mxu0 0.0
        %1140 = vmatpush1.msra.mxu0 %v1104
        %1141 = vmatprep.subr.mxu0 0.0
        %1142 = vmatpush2.msra.mxu0 0.0
        %1143 = vmatprep.subr.mxu0 0.0
        %1144 = vmatpush2.msra.mxu0 0.0
        %1145 = vmatprep.subr.mxu0 0.0
        %1146 = vmatpush2.msra.mxu0 0.0
        %1147 = vmatprep.subr.mxu0 0.0
        %1148 = vmatpush2.msra.mxu0 0.0
        %1149 = vmatprep.subr.mxu0 0.0
        %1150 = vmatpush2.msra.mxu0 0.0
        %1151 = vmatprep.subr.mxu0 0.0
        %1152 = vmatpush2.msra.mxu0 0.0
        %1153 = vmatprep.subr.mxu0 0.0
        %1154 = vmatpush2.msra.mxu0 0.0
        %1155 = vmatprep.subr.mxu0 0.0
        %1156 = vmatpush2.msra.mxu0 0.0
        %1157 = vmatprep.subr.mxu0 0.0
        %1158 = vmatpush2.msra.mxu0 0.0
        %1159 = vmatprep.subr.mxu0 0.0
        %1160 = vmatpush2.msra.mxu0 0.0
        %1161 = vmatprep.subr.mxu0 0.0
        %1162 = vmatpush2.msra.mxu0 0.0
        %1163 = vmatprep.subr.mxu0 0.0
        %1164 = vmatpush2.msra.mxu0 0.0
        %1165 = vmatprep.subr.mxu0 0.0
        %1166 = vmatpush2.msra.mxu0 0.0
        %1167 = vmatprep.subr.mxu0 0.0
        %1168 = vmatpush2.msra.mxu0 0.0
        %1169 = vmatprep.subr.mxu0 0.0
        %1170 = vmatpush2.msra.mxu0 0.0
        %1171 = vmatprep.subr.mxu0 0.0
        %1172 = vmatpush2.msra.mxu0 0.0
        %1173 = vmatprep.mubr.f32.mxu0 0.0
        %1174 = vmatmul.mubr.f32.gmra.mxu0 %v1107
        %v1175 = vpop.f32.mrf.mxu0
        %v1176 = vadd.f32 0.0, %v1175
        %v1177 = vpop.f32.mrf.mxu0
        %1178 = vdwg.mxu0
        %1179 = vrot.lane.b32.xlu0 %v683, 64
        %v1180 = vpop.permute.xlu0 %1179
        %v1183 = vsel %vm688, %v1012, 0
        %1185 = vmatprep.subr.mxu0 0.0
        %1186 = vmatpush1.msra.mxu0 0.0
        %1187 = vmatprep.subr.mxu0 0.0
        %1188 = vmatpush1.msra.mxu0 0.0
        %1189 = vmatprep.subr.mxu0 0.0
        %1190 = vmatpush1.msra.mxu0 0.0
        %1191 = vmatprep.subr.mxu0 0.0
        %1192 = vmatpush1.msra.mxu0 0.0
        %1193 = vmatprep.subr.mxu0 0.0
        %1194 = vmatpush1.msra.mxu0 0.0
        %1195 = vmatprep.subr.mxu0 0.0
        %1196 = vmatpush1.msra.mxu0 0.0
        %1197 = vmatprep.subr.mxu0 0.0
        %1198 = vmatpush1.msra.mxu0 0.0
        %1199 = vmatprep.subr.mxu0 0.0
        %1200 = vmatpush1.msra.mxu0 0.0
        %1201 = vmatprep.subr.mxu0 0.0
        %1202 = vmatpush1.msra.mxu0 0.0
        %1203 = vmatprep.subr.mxu0 0.0
        %1204 = vmatpush1.msra.mxu0 0.0
        %1205 = vmatprep.subr.mxu0 0.0
        %1206 = vmatpush1.msra.mxu0 0.0
        %1207 = vmatprep.subr.mxu0 0.0
        %1208 = vmatpush1.msra.mxu0 0.0
        %1209 = vmatprep.subr.mxu0 0.0
        %1210 = vmatpush1.msra.mxu0 0.0
        %1211 = vmatprep.subr.mxu0 0.0
        %1212 = vmatpush1.msra.mxu0 0.0
        %1213 = vmatprep.subr.mxu0 0.0
        %1214 = vmatpush1.msra.mxu0 0.0
        %1215 = vmatprep.subr.mxu0 0.0
        %1216 = vmatpush1.msra.mxu0 %v1180
        %1217 = vmatprep.subr.mxu0 0.0
        %1218 = vmatpush2.msra.mxu0 0.0
        %1219 = vmatprep.subr.mxu0 0.0
        %1220 = vmatpush2.msra.mxu0 0.0
        %1221 = vmatprep.subr.mxu0 0.0
        %1222 = vmatpush2.msra.mxu0 0.0
        %1223 = vmatprep.subr.mxu0 0.0
        %1224 = vmatpush2.msra.mxu0 0.0
        %1225 = vmatprep.subr.mxu0 0.0
        %1226 = vmatpush2.msra.mxu0 0.0
        %1227 = vmatprep.subr.mxu0 0.0
        %1228 = vmatpush2.msra.mxu0 0.0
        %1229 = vmatprep.subr.mxu0 0.0
        %1230 = vmatpush2.msra.mxu0 0.0
        %1231 = vmatprep.subr.mxu0 0.0
        %1232 = vmatpush2.msra.mxu0 0.0
        %1233 = vmatprep.subr.mxu0 0.0
        %1234 = vmatpush2.msra.mxu0 0.0
        %1235 = vmatprep.subr.mxu0 0.0
        %1236 = vmatpush2.msra.mxu0 0.0
        %1237 = vmatprep.subr.mxu0 0.0
        %1238 = vmatpush2.msra.mxu0 0.0
        %1239 = vmatprep.subr.mxu0 0.0
        %1240 = vmatpush2.msra.mxu0 0.0
        %1241 = vmatprep.subr.mxu0 0.0
        %1242 = vmatpush2.msra.mxu0 0.0
        %1243 = vmatprep.subr.mxu0 0.0
        %1244 = vmatpush2.msra.mxu0 0.0
        %1245 = vmatprep.subr.mxu0 0.0
        %1246 = vmatpush2.msra.mxu0 0.0
        %1247 = vmatprep.subr.mxu0 0.0
        %1248 = vmatpush2.msra.mxu0 0.0
        %1249 = vmatprep.mubr.f32.mxu0 0.0
        %1250 = vmatmul.mubr.f32.gmra.mxu0 %v1183
        %v1251 = vpop.f32.mrf.mxu0
        %v1252 = vadd.f32 0.0, %v1251
        %v1253 = vpop.f32.mrf.mxu0
        %1254 = vdwg.mxu0
        %1255 = vrot.lane.b32.xlu0 %v685, 64
        %v1256 = vpop.permute.xlu0 %1255
        %v1259 = vsel %vm688, %v1014, 0
        %1261 = vmatprep.subr.mxu0 0.0
        %1262 = vmatpush1.msra.mxu0 0.0
        %1263 = vmatprep.subr.mxu0 0.0
        %1264 = vmatpush1.msra.mxu0 0.0
        %1265 = vmatprep.subr.mxu0 0.0
        %1266 = vmatpush1.msra.mxu0 0.0
        %1267 = vmatprep.subr.mxu0 0.0
        %1268 = vmatpush1.msra.mxu0 0.0
        %1269 = vmatprep.subr.mxu0 0.0
        %1270 = vmatpush1.msra.mxu0 0.0
        %1271 = vmatprep.subr.mxu0 0.0
        %1272 = vmatpush1.msra.mxu0 0.0
        %1273 = vmatprep.subr.mxu0 0.0
        %1274 = vmatpush1.msra.mxu0 0.0
        %1275 = vmatprep.subr.mxu0 0.0
        %1276 = vmatpush1.msra.mxu0 0.0
        %1277 = vmatprep.subr.mxu0 0.0
        %1278 = vmatpush1.msra.mxu0 0.0
        %1279 = vmatprep.subr.mxu0 0.0
        %1280 = vmatpush1.msra.mxu0 0.0
        %1281 = vmatprep.subr.mxu0 0.0
        %1282 = vmatpush1.msra.mxu0 0.0
        %1283 = vmatprep.subr.mxu0 0.0
        %1284 = vmatpush1.msra.mxu0 0.0
        %1285 = vmatprep.subr.mxu0 0.0
        %1286 = vmatpush1.msra.mxu0 0.0
        %1287 = vmatprep.subr.mxu0 0.0
        %1288 = vmatpush1.msra.mxu0 0.0
        %1289 = vmatprep.subr.mxu0 0.0
        %1290 = vmatpush1.msra.mxu0 0.0
        %1291 = vmatprep.subr.mxu0 0.0
        %1292 = vmatpush1.msra.mxu0 %v1256
        %1293 = vmatprep.subr.mxu0 0.0
        %1294 = vmatpush2.msra.mxu0 0.0
        %1295 = vmatprep.subr.mxu0 0.0
        %1296 = vmatpush2.msra.mxu0 0.0
        %1297 = vmatprep.subr.mxu0 0.0
        %1298 = vmatpush2.msra.mxu0 0.0
        %1299 = vmatprep.subr.mxu0 0.0
        %1300 = vmatpush2.msra.mxu0 0.0
        %1301 = vmatprep.subr.mxu0 0.0
        %1302 = vmatpush2.msra.mxu0 0.0
        %1303 = vmatprep.subr.mxu0 0.0
        %1304 = vmatpush2.msra.mxu0 0.0
        %1305 = vmatprep.subr.mxu0 0.0
        %1306 = vmatpush2.msra.mxu0 0.0
        %1307 = vmatprep.subr.mxu0 0.0
        %1308 = vmatpush2.msra.mxu0 0.0
        %1309 = vmatprep.subr.mxu0 0.0
        %1310 = vmatpush2.msra.mxu0 0.0
        %1311 = vmatprep.subr.mxu0 0.0
        %1312 = vmatpush2.msra.mxu0 0.0
        %1313 = vmatprep.subr.mxu0 0.0
        %1314 = vmatpush2.msra.mxu0 0.0
        %1315 = vmatprep.subr.mxu0 0.0
        %1316 = vmatpush2.msra.mxu0 0.0
        %1317 = vmatprep.subr.mxu0 0.0
        %1318 = vmatpush2.msra.mxu0 0.0
        %1319 = vmatprep.subr.mxu0 0.0
        %1320 = vmatpush2.msra.mxu0 0.0
        %1321 = vmatprep.subr.mxu0 0.0
        %1322 = vmatpush2.msra.mxu0 0.0
        %1323 = vmatprep.subr.mxu0 0.0
        %1324 = vmatpush2.msra.mxu0 0.0
        %1325 = vmatprep.mubr.f32.mxu0 0.0
        %1326 = vmatmul.mubr.f32.gmra.mxu0 %v1259
        %v1327 = vpop.f32.mrf.mxu0
        %v1328 = vadd.f32 0.0, %v1327
        %v1329 = vpop.f32.mrf.mxu0
        %1330 = vdwg.mxu0
        %v1331 = vrcp.pop %v1017
        %v1332 = vrcp.pop %v1020
        %v1333 = vrcp.pop %v1023
        %v1334 = vrcp.pop %v1026
        %v1335 = vmul.f32 %v1100, %v1331
        %v1336 = vmul.f32 %v1176, %v1332
        %v1337 = vmul.f32 %v1252, %v1333
        %v1338 = vmul.f32 %v1328, %v1334
        %1340 = vrot.lane.b32.xlu0 %v1336, 8
        %v1341 = vpop.permute.xlu0 %1340
        %1344 = vrot.lane.b32.xlu0 %v1337, 16
        %v1345 = vpop.permute.xlu0 %1344
        %1348 = vrot.lane.b32.xlu0 %v1338, 24
        %v1349 = vpop.permute.xlu0 %1348
        %v1351 = vsel %vm688, %v1335, %v1341
        %vm1352 = vcmask 130048
        %v1353 = vsel %vm1352, %v1351, %v1345
        %vm1354 = vcmask 195584
        %v1355 = vsel %vm1354, %v1353, %v1349
        %v1356 = vld [vmem:[%s496] sm:$0xff]
        %v1357 = vld [vmem:[%s496 + $0x8] sm:$0xff]
        %v1358 = vld [vmem:[%s496 + $0x10] sm:$0xff]
        %v1359 = vld [vmem:[%s496 + $0x18] sm:$0xff]
        %v1360 = vlaneseq
        %v1361 = vshrl.u32 %v1360, 7
        %v1362 = vsub.s32 1, %v1361
        %v1363 = vrot.slane %v596, %v1362
        %v1365 = vsel %vm605, %v1355, 0
        %1367 = vmatprep.subr.mxu0 0.0
        %1368 = vmatpush1.msra.mxu0 0.0
        %1369 = vmatprep.subr.mxu0 0.0
        %1370 = vmatpush1.msra.mxu0 0.0
        %1371 = vmatprep.subr.mxu0 0.0
        %1372 = vmatpush1.msra.mxu0 0.0
        %1373 = vmatprep.subr.mxu0 0.0
        %1374 = vmatpush1.msra.mxu0 0.0
        %1375 = vmatprep.subr.mxu0 0.0
        %1376 = vmatpush1.msra.mxu0 0.0
        %1377 = vmatprep.subr.mxu0 0.0
        %1378 = vmatpush1.msra.mxu0 0.0
        %1379 = vmatprep.subr.mxu0 0.0
        %1380 = vmatpush1.msra.mxu0 0.0
        %1381 = vmatprep.subr.mxu0 0.0
        %1382 = vmatpush1.msra.mxu0 0.0
        %1383 = vmatprep.subr.mxu0 0.0
        %1384 = vmatpush1.msra.mxu0 0.0
        %1385 = vmatprep.subr.mxu0 0.0
        %1386 = vmatpush1.msra.mxu0 0.0
        %1387 = vmatprep.subr.mxu0 0.0
        %1388 = vmatpush1.msra.mxu0 0.0
        %1389 = vmatprep.subr.mxu0 0.0
        %1390 = vmatpush1.msra.mxu0 0.0
        %1391 = vmatprep.subr.mxu0 0.0
        %1392 = vmatpush1.msra.mxu0 %v1359
        %1393 = vmatprep.subr.mxu0 0.0
        %1394 = vmatpush1.msra.mxu0 %v1358
        %1395 = vmatprep.subr.mxu0 0.0
        %1396 = vmatpush1.msra.mxu0 %v1357
        %1397 = vmatprep.subr.mxu0 0.0
        %1398 = vmatpush1.msra.mxu0 %v1356
        %1399 = vmatprep.subr.mxu0 0.0
        %1400 = vmatpush2.msra.mxu0 0.0
        %1401 = vmatprep.subr.mxu0 0.0
        %1402 = vmatpush2.msra.mxu0 0.0
        %1403 = vmatprep.subr.mxu0 0.0
        %1404 = vmatpush2.msra.mxu0 0.0
        %1405 = vmatprep.subr.mxu0 0.0
        %1406 = vmatpush2.msra.mxu0 0.0
        %1407 = vmatprep.subr.mxu0 0.0
        %1408 = vmatpush2.msra.mxu0 0.0
        %1409 = vmatprep.subr.mxu0 0.0
        %1410 = vmatpush2.msra.mxu0 0.0
        %1411 = vmatprep.subr.mxu0 0.0
        %1412 = vmatpush2.msra.mxu0 0.0
        %1413 = vmatprep.subr.mxu0 0.0
        %1414 = vmatpush2.msra.mxu0 0.0
        %1415 = vmatprep.subr.mxu0 0.0
        %1416 = vmatpush2.msra.mxu0 0.0
        %1417 = vmatprep.subr.mxu0 0.0
        %1418 = vmatpush2.msra.mxu0 0.0
        %1419 = vmatprep.subr.mxu0 0.0
        %1420 = vmatpush2.msra.mxu0 0.0
        %1421 = vmatprep.subr.mxu0 0.0
        %1422 = vmatpush2.msra.mxu0 0.0
        %1423 = vmatprep.subr.mxu0 0.0
        %1424 = vmatpush2.msra.mxu0 0.0
        %1425 = vmatprep.subr.mxu0 0.0
        %1426 = vmatpush2.msra.mxu0 0.0
        %1427 = vmatprep.subr.mxu0 0.0
        %1428 = vmatpush2.msra.mxu0 0.0
        %1429 = vmatprep.subr.mxu0 0.0
        %1430 = vmatpush2.msra.mxu0 0.0
        %1431 = vmatprep.mubr.f32.mxu0 0.0
        %1432 = vmatmul.mubr.f32.gmra.mxu0 %v1365
        %v1433 = vpop.f32.mrf.mxu0
        %v1434 = vadd.f32 %v1363, %v1433
        %v1435 = vpop.f32.mrf.mxu0
        %1436 = vdwg.mxu0
        %v1437 = vadd.f32 %v595, %v1434
        %v1438 = vsel %vm605, %v1437, 0.0
        %1439 = vadd.xlane.f32.xlu0 %v1438
        %v1440 = vpop.xlane.xlu0 %1439
        %v1441 = vrcp.pop 32.0
        %v1442 = vmul.f32 %v1440, %v1441
        %v1443 = vsub.f32 %v1437, %v1442
        %v1444 = vmul.f32 %v1443, %v1443
        %v1445 = vsel %vm605, %v1444, 0.0
        %1446 = vadd.xlane.f32.xlu0 %v1445
        %v1447 = vpop.xlane.xlu0 %1446
        %v1448 = vmul.f32 %v1447, %v1441
        %v1449 = vadd.f32 %v1448, 1e-05
        %v1450 = vrsqrt.pop %v1449
        %v1451 = vmul.f32 %v1443, %v1450
        %v1452 = vlaneseq
        %v1453 = vshrl.u32 %v1452, 7
        %v1454 = vsub.s32 2, %v1453
        %v1455 = vrot.slane %v596, %v1454
        %v1456 = vmul.f32 %v1451, %v1455
        %v1457 = vlaneseq
        %v1458 = vshrl.u32 %v1457, 7
        %v1459 = vsub.s32 3, %v1458
        %v1460 = vrot.slane %v596, %v1459
        %v1461 = vadd.f32 %v1456, %v1460
        %v1462 = vld [vmem:[%s501] sm:$0xff]
        %v1463 = vld [vmem:[%s501 + $0x8] sm:$0xff]
        %v1464 = vld [vmem:[%s501 + $0x10] sm:$0xff]
        %v1465 = vld [vmem:[%s501 + $0x18] sm:$0xff]
        %v1466 = vlaneseq
        %v1467 = vshrl.u32 %v1466, 7
        %v1468 = vsub.s32 6, %v1467
        %v1469 = vrot.slane %v596, %v1468
        %v1471 = vsel %vm605, %v1461, 0
        %1473 = vmatprep.subr.mxu0 0.0
        %1474 = vmatpush1.msra.mxu0 0.0
        %1475 = vmatprep.subr.mxu0 0.0
        %1476 = vmatpush1.msra.mxu0 0.0
        %1477 = vmatprep.subr.mxu0 0.0
        %1478 = vmatpush1.msra.mxu0 0.0
        %1479 = vmatprep.subr.mxu0 0.0
        %1480 = vmatpush1.msra.mxu0 0.0
        %1481 = vmatprep.subr.mxu0 0.0
        %1482 = vmatpush1.msra.mxu0 0.0
        %1483 = vmatprep.subr.mxu0 0.0
        %1484 = vmatpush1.msra.mxu0 0.0
        %1485 = vmatprep.subr.mxu0 0.0
        %1486 = vmatpush1.msra.mxu0 0.0
        %1487 = vmatprep.subr.mxu0 0.0
        %1488 = vmatpush1.msra.mxu0 0.0
        %1489 = vmatprep.subr.mxu0 0.0
        %1490 = vmatpush1.msra.mxu0 0.0
        %1491 = vmatprep.subr.mxu0 0.0
        %1492 = vmatpush1.msra.mxu0 0.0
        %1493 = vmatprep.subr.mxu0 0.0
        %1494 = vmatpush1.msra.mxu0 0.0
        %1495 = vmatprep.subr.mxu0 0.0
        %1496 = vmatpush1.msra.mxu0 0.0
        %1497 = vmatprep.subr.mxu0 0.0
        %1498 = vmatpush1.msra.mxu0 %v1465
        %1499 = vmatprep.subr.mxu0 0.0
        %1500 = vmatpush1.msra.mxu0 %v1464
        %1501 = vmatprep.subr.mxu0 0.0
        %1502 = vmatpush1.msra.mxu0 %v1463
        %1503 = vmatprep.subr.mxu0 0.0
        %1504 = vmatpush1.msra.mxu0 %v1462
        %1505 = vmatprep.subr.mxu0 0.0
        %1506 = vmatpush2.msra.mxu0 0.0
        %1507 = vmatprep.subr.mxu0 0.0
        %1508 = vmatpush2.msra.mxu0 0.0
        %1509 = vmatprep.subr.mxu0 0.0
        %1510 = vmatpush2.msra.mxu0 0.0
        %1511 = vmatprep.subr.mxu0 0.0
        %1512 = vmatpush2.msra.mxu0 0.0
        %1513 = vmatprep.subr.mxu0 0.0
        %1514 = vmatpush2.msra.mxu0 0.0
        %1515 = vmatprep.subr.mxu0 0.0
        %1516 = vmatpush2.msra.mxu0 0.0
        %1517 = vmatprep.subr.mxu0 0.0
        %1518 = vmatpush2.msra.mxu0 0.0
        %1519 = vmatprep.subr.mxu0 0.0
        %1520 = vmatpush2.msra.mxu0 0.0
        %1521 = vmatprep.subr.mxu0 0.0
        %1522 = vmatpush2.msra.mxu0 0.0
        %1523 = vmatprep.subr.mxu0 0.0
        %1524 = vmatpush2.msra.mxu0 0.0
        %1525 = vmatprep.subr.mxu0 0.0
        %1526 = vmatpush2.msra.mxu0 0.0
        %1527 = vmatprep.subr.mxu0 0.0
        %1528 = vmatpush2.msra.mxu0 0.0
        %1529 = vmatprep.subr.mxu0 0.0
        %1530 = vmatpush2.msra.mxu0 0.0
        %1531 = vmatprep.subr.mxu0 0.0
        %1532 = vmatpush2.msra.mxu0 0.0
        %1533 = vmatprep.subr.mxu0 0.0
        %1534 = vmatpush2.msra.mxu0 0.0
        %1535 = vmatprep.subr.mxu0 0.0
        %1536 = vmatpush2.msra.mxu0 0.0
        %1537 = vmatprep.mubr.f32.mxu0 0.0
        %1538 = vmatmul.mubr.f32.gmra.mxu0 %v1471
        %v1539 = vpop.f32.mrf.mxu0
        %v1540 = vadd.f32 %v1469, %v1539
        %v1541 = vpop.f32.mrf.mxu0
        %1542 = vdwg.mxu0
        %v1543 = vmax.f32 %v1540, 0.0
        %v1544 = vld [vmem:[%s506] sm:$0xff]
        %v1545 = vld [vmem:[%s506 + $0x8] sm:$0xff]
        %v1546 = vld [vmem:[%s506 + $0x10] sm:$0xff]
        %v1547 = vld [vmem:[%s506 + $0x18] sm:$0xff]
        %v1548 = vld [vmem:[%s506 + $0x20] sm:$0xff]
        %v1549 = vld [vmem:[%s506 + $0x28] sm:$0xff]
        %v1550 = vld [vmem:[%s506 + $0x30] sm:$0xff]
        %v1551 = vld [vmem:[%s506 + $0x38] sm:$0xff]
        %v1552 = vlaneseq
        %v1553 = vshrl.u32 %v1552, 7
        %v1554 = vsub.s32 7, %v1553
        %v1555 = vrot.slane %v596, %v1554
        %vm1556 = vcmask 523264
        %v1558 = vsel %vm1556, %v1543, 0
        %1560 = vmatprep.subr.mxu0 0.0
        %1561 = vmatpush1.msra.mxu0 0.0
        %1562 = vmatprep.subr.mxu0 0.0
        %1563 = vmatpush1.msra.mxu0 0.0
        %1564 = vmatprep.subr.mxu0 0.0
        %1565 = vmatpush1.msra.mxu0 0.0
        %1566 = vmatprep.subr.mxu0 0.0
        %1567 = vmatpush1.msra.mxu0 0.0
        %1568 = vmatprep.subr.mxu0 0.0
        %1569 = vmatpush1.msra.mxu0 0.0
        %1570 = vmatprep.subr.mxu0 0.0
        %1571 = vmatpush1.msra.mxu0 0.0
        %1572 = vmatprep.subr.mxu0 0.0
        %1573 = vmatpush1.msra.mxu0 0.0
        %1574 = vmatprep.subr.mxu0 0.0
        %1575 = vmatpush1.msra.mxu0 0.0
        %1576 = vmatprep.subr.mxu0 0.0
        %1577 = vmatpush1.msra.mxu0 %v1551
        %1578 = vmatprep.subr.mxu0 0.0
        %1579 = vmatpush1.msra.mxu0 %v1550
        %1580 = vmatprep.subr.mxu0 0.0
        %1581 = vmatpush1.msra.mxu0 %v1549
        %1582 = vmatprep.subr.mxu0 0.0
        %1583 = vmatpush1.msra.mxu0 %v1548
        %1584 = vmatprep.subr.mxu0 0.0
        %1585 = vmatpush1.msra.mxu0 %v1547
        %1586 = vmatprep.subr.mxu0 0.0
        %1587 = vmatpush1.msra.mxu0 %v1546
        %1588 = vmatprep.subr.mxu0 0.0
        %1589 = vmatpush1.msra.mxu0 %v1545
        %1590 = vmatprep.subr.mxu0 0.0
        %1591 = vmatpush1.msra.mxu0 %v1544
        %1592 = vmatprep.subr.mxu0 0.0
        %1593 = vmatpush2.msra.mxu0 0.0
        %1594 = vmatprep.subr.mxu0 0.0
        %1595 = vmatpush2.msra.mxu0 0.0
        %1596 = vmatprep.subr.mxu0 0.0
        %1597 = vmatpush2.msra.mxu0 0.0
        %1598 = vmatprep.subr.mxu0 0.0
        %1599 = vmatpush2.msra.mxu0 0.0
        %1600 = vmatprep.subr.mxu0 0.0
        %1601 = vmatpush2.msra.mxu0 0.0
        %1602 = vmatprep.subr.mxu0 0.0
        %1603 = vmatpush2.msra.mxu0 0.0
        %1604 = vmatprep.subr.mxu0 0.0
        %1605 = vmatpush2.msra.mxu0 0.0
        %1606 = vmatprep.subr.mxu0 0.0
        %1607 = vmatpush2.msra.mxu0 0.0
        %1608 = vmatprep.subr.mxu0 0.0
        %1609 = vmatpush2.msra.mxu0 0.0
        %1610 = vmatprep.subr.mxu0 0.0
        %1611 = vmatpush2.msra.mxu0 0.0
        %1612 = vmatprep.subr.mxu0 0.0
        %1613 = vmatpush2.msra.mxu0 0.0
        %1614 = vmatprep.subr.mxu0 0.0
        %1615 = vmatpush2.msra.mxu0 0.0
        %1616 = vmatprep.subr.mxu0 0.0
        %1617 = vmatpush2.msra.mxu0 0.0
        %1618 = vmatprep.subr.mxu0 0.0
        %1619 = vmatpush2.msra.mxu0 0.0
        %1620 = vmatprep.subr.mxu0 0.0
        %1621 = vmatpush2.msra.mxu0 0.0
        %1622 = vmatprep.subr.mxu0 0.0
        %1623 = vmatpush2.msra.mxu0 0.0
        %1624 = vmatprep.mubr.f32.mxu0 0.0
        %1625 = vmatmul.mubr.f32.gmra.mxu0 %v1558
        %v1626 = vpop.f32.mrf.mxu0
        %v1627 = vadd.f32 %v1555, %v1626
        %v1628 = vpop.f32.mrf.mxu0
        %1629 = vdwg.mxu0
        %v1630 = vadd.f32 %v1461, %v1627
        %v1631 = vsel %vm605, %v1630, 0.0
        %1632 = vadd.xlane.f32.xlu0 %v1631
        %v1633 = vpop.xlane.xlu0 %1632
        %v1634 = vmul.f32 %v1633, %v1441
        %v1635 = vsub.f32 %v1630, %v1634
        %v1636 = vmul.f32 %v1635, %v1635
        %v1637 = vsel %vm605, %v1636, 0.0
        %1638 = vadd.xlane.f32.xlu0 %v1637
        %v1639 = vpop.xlane.xlu0 %1638
        %v1640 = vmul.f32 %v1639, %v1441
        %v1641 = vadd.f32 %v1640, 1e-05
        %v1642 = vrsqrt.pop %v1641
        %v1643 = vmul.f32 %v1635, %v1642
        %v1644 = vlaneseq
        %v1645 = vshrl.u32 %v1644, 7
        %v1646 = vsub.s32 4, %v1645
        %v1647 = vrot.slane %v596, %v1646
        %v1648 = vmul.f32 %v1643, %v1647
        %v1649 = vlaneseq
        %v1650 = vshrl.u32 %v1649, 7
        %v1651 = vsub.s32 5, %v1650
        %v1652 = vrot.slane %v596, %v1651
        %v1653 = vadd.f32 %v1648, %v1652
        %1654 = vst.msk [vmem:[#allocation2] sm:$0xff] %vm605, %v1653
        %p1655 = scmp.eq.s32.totalorder %s31, 1
        // Predicated region
        $region77: #{tpu_custom_call.1} parent=59 // pred_check
          %p1656 = pneg %p1655
        $region78: #{tpu_custom_call.1} parent=59 // pred_check_branch
          %1658 = sbr.rel (%p1656) target = $region80
        $region79: #{tpu_custom_call.1} parent=59 // pred_region
          %v1659 = vld [vmem:[%s8] sm:$0xff]
          %v1660 = vld [vmem:[%s8 + $0x8] sm:$0xff]
          %v1661 = vld [vmem:[%s8 + $0x10] sm:$0xff]
          %v1662 = vld [vmem:[%s8 + $0x18] sm:$0xff]
          %v1663 = vld [vmem:[%s9] sm:$0x1]
          %v1665 = vlaneseq
          %v1666 = vshrl.u32 %v1665, 7
          %v1667 = vsub.s32 0, %v1666
          %v1668 = vrot.slane %v1663, %v1667
          %v1671 = vsel %vm605, %v1653, 0
          %1673 = vmatprep.subr.mxu0 0.0
          %1674 = vmatpush1.msra.mxu0 0.0
          %1675 = vmatprep.subr.mxu0 0.0
          %1676 = vmatpush1.msra.mxu0 0.0
          %1677 = vmatprep.subr.mxu0 0.0
          %1678 = vmatpush1.msra.mxu0 0.0
          %1679 = vmatprep.subr.mxu0 0.0
          %1680 = vmatpush1.msra.mxu0 0.0
          %1681 = vmatprep.subr.mxu0 0.0
          %1682 = vmatpush1.msra.mxu0 0.0
          %1683 = vmatprep.subr.mxu0 0.0
          %1684 = vmatpush1.msra.mxu0 0.0
          %1685 = vmatprep.subr.mxu0 0.0
          %1686 = vmatpush1.msra.mxu0 0.0
          %1687 = vmatprep.subr.mxu0 0.0
          %1688 = vmatpush1.msra.mxu0 0.0
          %1689 = vmatprep.subr.mxu0 0.0
          %1690 = vmatpush1.msra.mxu0 0.0
          %1691 = vmatprep.subr.mxu0 0.0
          %1692 = vmatpush1.msra.mxu0 0.0
          %1693 = vmatprep.subr.mxu0 0.0
          %1694 = vmatpush1.msra.mxu0 0.0
          %1695 = vmatprep.subr.mxu0 0.0
          %1696 = vmatpush1.msra.mxu0 0.0
          %1697 = vmatprep.subr.mxu0 0.0
          %1698 = vmatpush1.msra.mxu0 %v1662
          %1699 = vmatprep.subr.mxu0 0.0
          %1700 = vmatpush1.msra.mxu0 %v1661
          %1701 = vmatprep.subr.mxu0 0.0
          %1702 = vmatpush1.msra.mxu0 %v1660
          %1703 = vmatprep.subr.mxu0 0.0
          %1704 = vmatpush1.msra.mxu0 %v1659
          %1705 = vmatprep.subr.mxu0 0.0
          %1706 = vmatpush2.msra.mxu0 0.0
          %1707 = vmatprep.subr.mxu0 0.0
          %1708 = vmatpush2.msra.mxu0 0.0
          %1709 = vmatprep.subr.mxu0 0.0
          %1710 = vmatpush2.msra.mxu0 0.0
          %1711 = vmatprep.subr.mxu0 0.0
          %1712 = vmatpush2.msra.mxu0 0.0
          %1713 = vmatprep.subr.mxu0 0.0
          %1714 = vmatpush2.msra.mxu0 0.0
          %1715 = vmatprep.subr.mxu0 0.0
          %1716 = vmatpush2.msra.mxu0 0.0
          %1717 = vmatprep.subr.mxu0 0.0
          %1718 = vmatpush2.msra.mxu0 0.0
          %1719 = vmatprep.subr.mxu0 0.0
          %1720 = vmatpush2.msra.mxu0 0.0
          %1721 = vmatprep.subr.mxu0 0.0
          %1722 = vmatpush2.msra.mxu0 0.0
          %1723 = vmatprep.subr.mxu0 0.0
          %1724 = vmatpush2.msra.mxu0 0.0
          %1725 = vmatprep.subr.mxu0 0.0
          %1726 = vmatpush2.msra.mxu0 0.0
          %1727 = vmatprep.subr.mxu0 0.0
          %1728 = vmatpush2.msra.mxu0 0.0
          %1729 = vmatprep.subr.mxu0 0.0
          %1730 = vmatpush2.msra.mxu0 0.0
          %1731 = vmatprep.subr.mxu0 0.0
          %1732 = vmatpush2.msra.mxu0 0.0
          %1733 = vmatprep.subr.mxu0 0.0
          %1734 = vmatpush2.msra.mxu0 0.0
          %1735 = vmatprep.subr.mxu0 0.0
          %1736 = vmatpush2.msra.mxu0 0.0
          %1737 = vmatprep.mubr.f32.mxu0 0.0
          %1738 = vmatmul.mubr.f32.gmra.mxu0 %v1671
          %v1739 = vpop.f32.mrf.mxu0
          %v1740 = vadd.f32 %v1668, %v1739
          %v1741 = vpop.f32.mrf.mxu0
          %1742 = vdwg.mxu0
          %1743 = vst [vmem:[%s482] sm:$0xff] %v1740
        $region80: #{tpu_custom_call.1} parent=59 // pred_fallthru
          _
        %s1744 = sand.u32 %s286, 1
        %s1745 = scalar_lea.sflag [#allocation5], %s1744
        %s1746 = sand.u32 %s286, 1
        %s1747 = smul.addr %s1746, 8
        %s1748 = scalar_lea.vmem [#allocation9], %s1747
        // Predicated region
        $region81: #{tpu_custom_call.1} parent=59 // pred_check
          %p1749 = pneg %p296
        $region82: #{tpu_custom_call.1} parent=59 // pred_check_branch
          %1751 = sbr.rel (%p1749) target = $region84
        $region83: #{tpu_custom_call.1} parent=59 // pred_region
          %s1753 = ssub.s32 128, 128
          %1754 = vsyncadd %s1745, %s1753
          %s1755 = smul.addr %s30, 128
          %s1756 = scalar_lea.hbm %s10, %s1755
          %s1758 = sshll.u32 %s1748, 4
          %s1759 = int_to_ptr.vmem [resolvable:$true] %s1758
          %1761 = dma.vmem_to_hbm [thread:$0]  %s1759, 128, %s1756, %s1745
        $region84: #{tpu_custom_call.1} parent=59 // pred_fallthru
          _
      $region60: #{tpu_custom_call.1} parent=5 // pred_fallthru
        _
      %p1762 = scmp.le.s32.totalorder 2, %s21
      // Predicated region
      $region85: #{tpu_custom_call.1} parent=5 // pred_check
        %p1763 = pneg %p1762
      $region86: #{tpu_custom_call.1} parent=5 // pred_check_branch
        %1765 = sbr.rel (%p1763) target = $region88
      $region87: #{tpu_custom_call.1} parent=5 // pred_region
        %s1766 = ssub.s32 %s21, 2
        // Predicated region
        $region89: #{tpu_custom_call.1} parent=87 // pred_check
          %p1767 = pneg %p302
        $region90: #{tpu_custom_call.1} parent=87 // pred_check_branch
          %1769 = sbr.rel (%p1767) target = $region92
        $region91: #{tpu_custom_call.1} parent=87 // pred_region
          %s1770 = sand.u32 %s287, 1
          %s1771 = scalar_lea.sflag [#allocation5], %s1770
          %s1772 = sand.u32 %s287, 1
          %s1773 = smul.addr %s1772, 8
          %s1774 = scalar_lea.vmem [#allocation9], %s1773
          %1775 = dma.done %s1771, 128
        $region92: #{tpu_custom_call.1} parent=87 // pred_fallthru
          _
      $region88: #{tpu_custom_call.1} parent=5 // pred_fallthru
        _
    $region6: #{tpu_custom_call.1} parent=1 // loop_footer
      %s25 = sadd.s32 1, %s21
    $region7: #{tpu_custom_call.1} parent=1 // loop_footer_branch
      %20 = sbr.rel target = $region3
    $region8: #{tpu_custom_call.1} parent=1 // loop_exit
      _
    %1776 = vsyncpa [#allocation4], 1
    %s1777 = scalar_lea.sflag [#allocation4], 1
    %1778 = vsyncpa %s1777, 1
    %1779 = vsyncpa [#allocation7], 1
    %1780 = vsyncpa [#allocation5], 1
    %s1781 = scalar_lea.sflag [#allocation5], 1
    %1782 = vsyncpa %s1781, 1

</llo_original>
